<compile_context>
chip_gen: v7x
topology: tpu7x:2x2x1
jax: 0.10.0
libtpu: 0.0.40
codegen_flags: <defaults>
</compile_context>

<pallas_src>
import functools
import math

import jax
import jax.numpy as jnp
from jax import lax
from jax.experimental import pallas as pl
from jax.experimental.pallas import tpu as pltpu


def _layer_norm(v, g, b, eps=1e-5):
    mu = jnp.mean(v, axis=-1, keepdims=True)
    c = v - mu
    var = jnp.mean(c * c, axis=-1, keepdims=True)
    return c * lax.rsqrt(var + eps) * g + b


def _gelu_tanh(v):
    # TODO(synk): PyTorch nn.GELU() default is the exact erf form; the tanh
    # approximation (max abs deviation ~1e-3) is used since erf lowering in
    # Mosaic is not guaranteed.
    return 0.5 * v * (1.0 + jnp.tanh(0.7978845608028654 * (v + 0.044715 * v * v * v)))


def _attblock_kernel(x_ref, m_ref,
                     ln1_g_ref, ln1_b_ref,
                     wqkv_ref, wo_ref,
                     ln2_g_ref, ln2_b_ref,
                     w1_ref, b1_ref,
                     ln3_g_ref, ln3_b_ref,
                     w2_ref, b2_ref,
                     o_ref,
                     q_s, k_s, v_s,
                     *, num_heads, tq):
    f32 = jnp.float32
    cdt = wqkv_ref.dtype                      # MXU operand dtype (bf16 fast path)
    t = pl.program_id(1)
    s_len, d = x_ref.shape                    # x_ref: (S, D)  (batch dim squeezed)
    dh = d // num_heads
    scale = 1.0 / math.sqrt(dh)

    # ---- once per batch row: LN1(x*mask) + fused QKV for the whole sequence
    @pl.when(t == 0)
    def _():
        x_all = x_ref[...].astype(f32)                         # (S, D)
        m_all = m_ref[...].astype(f32)                         # (S, 1)
        xn = _layer_norm(x_all * m_all,
                         ln1_g_ref[...].astype(f32),
                         ln1_b_ref[...].astype(f32)).astype(cdt)
        qkv = jnp.dot(xn, wqkv_ref[...], preferred_element_type=f32)   # (S, 3D)
        q_s[...] = qkv[:, :d].astype(cdt)
        k_s[...] = qkv[:, d:2 * d].astype(cdt)
        v_s[...] = qkv[:, 2 * d:].astype(cdt)

    # ---- per query tile -----------------------------------------------------
    q_off = pl.multiple_of(t * tq, tq)
    x_t = x_ref[pl.ds(q_off, tq), :].astype(f32)               # (TQ, D)
    m_t = m_ref[pl.ds(q_off, tq), :].astype(f32)               # (TQ, 1)
    m_b = jnp.broadcast_to(m_t, (tq, d))                       # single hoisted broadcast
    q_t = q_s[pl.ds(q_off, tq), :]                             # (TQ, D) in cdt

    # attention: accumulate the output projection per head (no concatenate)
    acc = jnp.zeros((tq, d), f32)
    for h in range(num_heads):                                 # static unroll over heads
        lo = h * dh
        qh = q_t[:, lo:lo + dh]
        kh = k_s[:, lo:lo + dh]
        vh = v_s[:, lo:lo + dh]
        # q @ k^T via dot_general (contract last dims) -> no explicit transpose
        s = lax.dot_general(qh, kh, (((1,), (1,)), ((), ())),
                            preferred_element_type=f32) * scale          # (TQ, S)
        s = s - jnp.max(s, axis=-1, keepdims=True)
        e = jnp.exp(s)
        p = (e * pl.reciprocal(jnp.sum(e, axis=-1, keepdims=True),
                               approx=True)).astype(cdt)
        oh = jnp.dot(p, vh, preferred_element_type=f32).astype(cdt)      # (TQ, dh)
        acc = acc + jnp.dot(oh, wo_ref[lo:lo + dh, :], preferred_element_type=f32)
    x_t = x_t + acc * m_b

    # ---- MLP branch: fc2(LN_mlp(GELU(fc1(LN2(x))))) * mask ------------------
    hN = _layer_norm(x_t, ln2_g_ref[...].astype(f32),
                     ln2_b_ref[...].astype(f32)).astype(cdt)
    a = jnp.dot(hN, w1_ref[...], preferred_element_type=f32) + b1_ref[...].astype(f32)
    a = _gelu_tanh(a)
    a = _layer_norm(a, ln3_g_ref[...].astype(f32),
                    ln3_b_ref[...].astype(f32)).astype(cdt)
    y = jnp.dot(a, w2_ref[...], preferred_element_type=f32) + b2_ref[...].astype(f32)

    o_ref[...] = (x_t + y * m_b).astype(o_ref.dtype)


def attblock_forward(x, mask, params, *, num_heads, compute_dtype=None, seq_tile=256):
    """JAX/Pallas forward of AttBlock (attn_mask=None, skip=None, dropout=0).

    x:    (B, S, D)   mask: (B, S, 1)
    params (PyTorch-convention shapes):
      ln1_g/b, ln2_g/b : (D,)
      wq, wk, wv, wo   : (D, D)   (nn.MultiheadAttention, bias=False)
      w1 : (Hd, D), b1 : (Hd,)    ln3_g/b : (Hd,)    w2 : (D, Hd), b2 : (D,)
    compute_dtype: dtype of MXU operands / resident weights (default: x.dtype;
                   pass jnp.bfloat16 for the native full-rate MXU path).
    """
    # TODO(synk): attn_mask and the skip/skip_linear path are not implemented
    # (module defaults attn_mask=None / skip=False); dropout is identity.
    B, S, D = x.shape
    assert D % num_heads == 0
    Hd = params["w1"].shape[0]

    cdt = compute_dtype if compute_dtype is not None else x.dtype
    tq = S if S <= seq_tile else seq_tile
    assert S % tq == 0 and (tq % 8 == 0 or tq == S), "query tile must divide S"
    nt = S // tq

    f32 = jnp.float32
    row = lambda p: p.reshape(1, -1).astype(f32)         # LN params / biases stay f32
    wmat = lambda p: jnp.transpose(p).astype(cdt)        # (out,in) -> (in,out)

    wqkv = jnp.concatenate([jnp.transpose(params["wq"]),
                            jnp.transpose(params["wk"]),
                            jnp.transpose(params["wv"])], axis=1).astype(cdt)  # (D, 3D)

    weights = (
        row(params["ln1_g"]), row(params["ln1_b"]),
        wqkv, wmat(params["wo"]),
        row(params["ln2_g"]), row(params["ln2_b"]),
        wmat(params["w1"]), row(params["b1"]),
        row(params["ln3_g"]), row(params["ln3_b"]),
        wmat(params["w2"]), row(params["b2"]),
    )

    def full_spec(a):        # whole weight resident in VMEM for the whole call
        return pl.BlockSpec(a.shape, lambda b, t: (0, 0))

    grid_spec = pltpu.PrefetchScalarGridSpec(
        num_scalar_prefetch=0,
        grid=(B, nt),
        in_specs=[
            pl.BlockSpec((None, S, D), lambda b, t: (b, 0, 0)),   # x (full seq / batch)
            pl.BlockSpec((None, S, 1), lambda b, t: (b, 0, 0)),   # mask
        ] + [full_spec(a) for a in weights],
        out_specs=pl.BlockSpec((None, tq, D), lambda b, t: (b, t, 0)),
        scratch_shapes=[pltpu.VMEM((S, D), cdt)] * 3,             # q / k / v scratch
    )

    # Explicit VMEM budget (weights + double-buffered I/O blocks + scratch).
    wbytes = sum(int(a.size) * a.dtype.itemsize for a in weights)
    io_bytes = (S * D + tq * D) * x.dtype.itemsize + S * mask.dtype.itemsize
    scratch_bytes = 3 * S * D * wqkv.dtype.itemsize
    vmem_limit = int(min(128 * 1024 * 1024,
                         max(8 * 1024 * 1024,
                             2 * (wbytes + io_bytes) + scratch_bytes + (4 << 20))))

    flops = B * S * (8 * D * D + 4 * D * Hd) + 4 * B * S * S * D
    transcendentals = B * S * S * num_heads + B * S * Hd
    bytes_accessed = 2 * B * S * D * x.dtype.itemsize + B * S * mask.dtype.itemsize + wbytes

    kernel = functools.partial(_attblock_kernel, num_heads=num_heads, tq=tq)
    return pl.pallas_call(
        kernel,
        out_shape=jax.ShapeDtypeStruct((B, S, D), x.dtype),
        grid_spec=grid_spec,
        compiler_params=pltpu.CompilerParams(
            dimension_semantics=("parallel", "arbitrary"),
            vmem_limit_bytes=vmem_limit),
        cost_estimate=pl.CostEstimate(flops=int(flops),
                                      transcendentals=int(transcendentals),
                                      bytes_accessed=int(bytes_accessed)),
    )(x, mask, *weights)


# ----------------------------- pure-JAX reference ---------------------------
def attblock_ref(x, mask, params, *, num_heads):
    B, S, D = x.shape
    dh = D // num_heads
    hp = "highest"

    def ln(v, g, b):
        mu = v.mean(-1, keepdims=True)
        c = v - mu
        var = (c * c).mean(-1, keepdims=True)
        return c / jnp.sqrt(var + 1e-5) * g + b

    xm = x * mask
    xn = ln(xm, params["ln1_g"], params["ln1_b"])
    q = jnp.einsum("bsd,ed->bse", xn, params["wq"], precision=hp)
    k = jnp.einsum("bsd,ed->bse", xn, params["wk"], precision=hp)
    v = jnp.einsum("bsd,ed->bse", xn, params["wv"], precision=hp)
    qh = q.reshape(B, S, num_heads, dh).transpose(0, 2, 1, 3)
    kh = k.reshape(B, S, num_heads, dh).transpose(0, 2, 1, 3)
    vh = v.reshape(B, S, num_heads, dh).transpose(0, 2, 1, 3)
    s = jnp.einsum("bhqd,bhkd->bhqk", qh, kh, precision=hp) / jnp.sqrt(dh)
    p = jax.nn.softmax(s, axis=-1)
    o = jnp.einsum("bhqk,bhkd->bhqd", p, vh, precision=hp)
    o = o.transpose(0, 2, 1, 3).reshape(B, S, D)
    attn = jnp.einsum("bsd,ed->bse", o, params["wo"], precision=hp)
    x = x + attn * mask

    h = ln(x, params["ln2_g"], params["ln2_b"])
    a = jnp.einsum("bsd,hd->bsh", h, params["w1"], precision=hp) + params["b1"]
    a = 0.5 * a * (1.0 + jnp.tanh(0.7978845608028654 * (a + 0.044715 * a ** 3)))
    a = ln(a, params["ln3_g"], params["ln3_b"])
    y = jnp.einsum("bsh,dh->bsd", a, params["w2"], precision=hp) + params["b2"]
    return x + y * mask


if __name__ == "__main__":
    B, S, D, H = 2, 8, 32, 4
    Hd = int(D * 4.0)     # mlp_ratio=4.0

    key = jax.random.PRNGKey(0)
    ks = jax.random.split(key, 16)

    def nrm(k, shape, scale=1.0):
        return jax.random.normal(k, shape, jnp.float32) * scale

    params = {
        "ln1_g": 1.0 + 0.1 * nrm(ks[0], (D,)),
        "ln1_b": 0.1 * nrm(ks[1], (D,)),
        "wq": nrm(ks[2], (D, D), D ** -0.5),
        "wk": nrm(ks[3], (D, D), D ** -0.5),
        "wv": nrm(ks[4], (D, D), D ** -0.5),
        "wo": nrm(ks[5], (D, D), D ** -0.5),
        "ln2_g": 1.0 + 0.1 * nrm(ks[6], (D,)),
        "ln2_b": 0.1 * nrm(ks[7], (D,)),
        "w1": nrm(ks[8], (Hd, D), D ** -0.5),
        "b1": 0.1 * nrm(ks[9], (Hd,)),
        "ln3_g": 1.0 + 0.1 * nrm(ks[10], (Hd,)),
        "ln3_b": 0.1 * nrm(ks[11], (Hd,)),
        "w2": nrm(ks[12], (D, Hd), Hd ** -0.5),
        "b2": 0.1 * nrm(ks[13], (D,)),
    }
    x = jax.random.normal(ks[14], (B, S, D), jnp.float32)
    mask = (jax.random.uniform(ks[15], (B, S, 1)) > 0.2).astype(jnp.float32)

    y_ref = attblock_ref(x, mask, params, num_heads=H)

    # f32-operand run: tight check of the kernel algebra.
    y32 = jax.block_until_ready(
        attblock_forward(x, mask, params, num_heads=H, compute_dtype=jnp.float32))
    assert y32.shape == (B, S, D)
    err32 = float(jnp.max(jnp.abs(y32 - y_ref)))
    assert jnp.allclose(y32, y_ref, atol=2e-2, rtol=2e-2), f"f32 max abs err {err32}"

    # bf16-operand fast path (native MXU rate): looser tolerance vs f32 reference.
    ybf = jax.block_until_ready(
        attblock_forward(x, mask, params, num_heads=H, compute_dtype=jnp.bfloat16))
    errbf = float(jnp.max(jnp.abs(ybf - y_ref)))
    assert jnp.allclose(ybf, y_ref, atol=2e-1, rtol=2e-1), f"bf16 max abs err {errbf}"

    print("KERNEL_OK")
</pallas_src>

<mosaic_0001>
module attributes {stable_mosaic.version = 11 : i64} {
  func.func @_attblock_kernel(%arg0: i32, %arg1: i32, %arg2: memref<1x8x32xf32, #tpu.memory_space<vmem>>, %arg3: memref<1x8x1xf32, #tpu.memory_space<vmem>>, %arg4: memref<1x32xf32, #tpu.memory_space<vmem>>, %arg5: memref<1x32xf32, #tpu.memory_space<vmem>>, %arg6: memref<32x96xf32, #tpu.memory_space<vmem>>, %arg7: memref<32x32xf32, #tpu.memory_space<vmem>>, %arg8: memref<1x32xf32, #tpu.memory_space<vmem>>, %arg9: memref<1x32xf32, #tpu.memory_space<vmem>>, %arg10: memref<32x128xf32, #tpu.memory_space<vmem>>, %arg11: memref<1x128xf32, #tpu.memory_space<vmem>>, %arg12: memref<1x128xf32, #tpu.memory_space<vmem>>, %arg13: memref<1x128xf32, #tpu.memory_space<vmem>>, %arg14: memref<128x32xf32, #tpu.memory_space<vmem>>, %arg15: memref<1x32xf32, #tpu.memory_space<vmem>>, %arg16: memref<1x8x32xf32, #tpu.memory_space<vmem>>, %arg17: memref<8x32xf32, #tpu.memory_space<vmem>>, %arg18: memref<8x32xf32, #tpu.memory_space<vmem>>, %arg19: memref<8x32xf32, #tpu.memory_space<vmem>>) attributes {dimension_semantics = [#tpu.dimension_semantics<parallel>, #tpu.dimension_semantics<arbitrary>], iteration_bounds = array<i64: 2, 1>, scalar_prefetch = 0 : i64, scratch_operands = 3 : i64, tpu.core_type = #tpu.core_type<tc>, window_params = [{transform_indices = @transform_0, window_bounds = array<i64: 1, 8, 32>}, {transform_indices = @transform_1, window_bounds = array<i64: 1, 8, 1>}, {pipeline_mode = #tpu.pipeline_mode<synchronous>, transform_indices = @transform_2, window_bounds = array<i64: 1, 32>}, {pipeline_mode = #tpu.pipeline_mode<synchronous>, transform_indices = @transform_3, window_bounds = array<i64: 1, 32>}, {pipeline_mode = #tpu.pipeline_mode<synchronous>, transform_indices = @transform_4, window_bounds = array<i64: 32, 96>}, {pipeline_mode = #tpu.pipeline_mode<synchronous>, transform_indices = @transform_5, window_bounds = array<i64: 32, 32>}, {pipeline_mode = #tpu.pipeline_mode<synchronous>, transform_indices = @transform_6, window_bounds = array<i64: 1, 32>}, {pipeline_mode = #tpu.pipeline_mode<synchronous>, transform_indices = @transform_7, window_bounds = array<i64: 1, 32>}, {pipeline_mode = #tpu.pipeline_mode<synchronous>, transform_indices = @transform_8, window_bounds = array<i64: 32, 128>}, {pipeline_mode = #tpu.pipeline_mode<synchronous>, transform_indices = @transform_9, window_bounds = array<i64: 1, 128>}, {pipeline_mode = #tpu.pipeline_mode<synchronous>, transform_indices = @transform_10, window_bounds = array<i64: 1, 128>}, {pipeline_mode = #tpu.pipeline_mode<synchronous>, transform_indices = @transform_11, window_bounds = array<i64: 1, 128>}, {pipeline_mode = #tpu.pipeline_mode<synchronous>, transform_indices = @transform_12, window_bounds = array<i64: 128, 32>}, {pipeline_mode = #tpu.pipeline_mode<synchronous>, transform_indices = @transform_13, window_bounds = array<i64: 1, 32>}, {transform_indices = @transform_14, window_bounds = array<i64: 1, 8, 32>}]} {
    %c0_i32 = arith.constant 0 : i32
    %0 = arith.cmpi eq, %arg1, %c0_i32 : i32
    %1 = arith.extui %0 : i1 to i32
    %c0_i32_0 = arith.constant 0 : i32
    %2 = arith.cmpi ne, %1, %c0_i32_0 : i32
    scf.if %2 {
      %c0_85 = arith.constant 0 : index
      %c0_86 = arith.constant 0 : index
      %c0_87 = arith.constant 0 : index
      %170 = vector.load %arg2[%c0_85, %c0_86, %c0_87] : memref<1x8x32xf32, #tpu.memory_space<vmem>>, vector<1x8x32xf32>
      %171 = vector.shape_cast %170 : vector<1x8x32xf32> to vector<8x32xf32>
      %c0_88 = arith.constant 0 : index
      %c0_89 = arith.constant 0 : index
      %c0_90 = arith.constant 0 : index
      %172 = vector.load %arg3[%c0_88, %c0_89, %c0_90] : memref<1x8x1xf32, #tpu.memory_space<vmem>>, vector<1x8x1xf32>
      %173 = vector.shape_cast %172 : vector<1x8x1xf32> to vector<8x1xf32>
      %174 = vector.broadcast %173 : vector<8x1xf32> to vector<8x32xf32>
      %175 = arith.mulf %171, %174 : vector<8x32xf32>
      %c0_91 = arith.constant 0 : index
      %c0_92 = arith.constant 0 : index
      %176 = vector.load %arg4[%c0_91, %c0_92] : memref<1x32xf32, #tpu.memory_space<vmem>>, vector<1x32xf32>
      %c0_93 = arith.constant 0 : index
      %c0_94 = arith.constant 0 : index
      %177 = vector.load %arg5[%c0_93, %c0_94] : memref<1x32xf32, #tpu.memory_space<vmem>>, vector<1x32xf32>
      %cst_95 = arith.constant dense<0.000000e+00> : vector<8xf32>
      %178 = vector.multi_reduction <add>, %175, %cst_95 [1] : vector<8x32xf32> to vector<8xf32>
      %179 = vector.shape_cast %178 : vector<8xf32> to vector<8x1xf32>
      %cst_96 = arith.constant 3.200000e+01 : f32
      %180 = vector.broadcast %cst_96 : f32 to vector<8x1xf32>
      %181 = arith.divf %179, %180 : vector<8x1xf32>
      %182 = vector.broadcast %181 : vector<8x1xf32> to vector<8x32xf32>
      %183 = arith.subf %175, %182 : vector<8x32xf32>
      %184 = arith.mulf %183, %183 : vector<8x32xf32>
      %cst_97 = arith.constant dense<0.000000e+00> : vector<8xf32>
      %185 = vector.multi_reduction <add>, %184, %cst_97 [1] : vector<8x32xf32> to vector<8xf32>
      %186 = vector.shape_cast %185 : vector<8xf32> to vector<8x1xf32>
      %cst_98 = arith.constant 3.200000e+01 : f32
      %187 = vector.broadcast %cst_98 : f32 to vector<8x1xf32>
      %188 = arith.divf %186, %187 : vector<8x1xf32>
      %cst_99 = arith.constant 9.99999974E-6 : f32
      %189 = vector.broadcast %cst_99 : f32 to vector<8x1xf32>
      %190 = arith.addf %188, %189 : vector<8x1xf32>
      %191 = math.rsqrt %190 : vector<8x1xf32>
      %192 = vector.broadcast %191 : vector<8x1xf32> to vector<8x32xf32>
      %193 = arith.mulf %183, %192 : vector<8x32xf32>
      %194 = vector.broadcast %176 : vector<1x32xf32> to vector<8x32xf32>
      %195 = arith.mulf %193, %194 : vector<8x32xf32>
      %196 = vector.broadcast %177 : vector<1x32xf32> to vector<8x32xf32>
      %197 = arith.addf %195, %196 : vector<8x32xf32>
      %c0_100 = arith.constant 0 : index
      %c0_101 = arith.constant 0 : index
      %198 = vector.load %arg6[%c0_100, %c0_101] : memref<32x96xf32, #tpu.memory_space<vmem>>, vector<32x96xf32>
      %cst_102 = arith.constant dense<0.000000e+00> : vector<8x96xf32>
      %199 = tpu.matmul %197, %198, %cst_102 {dimension_numbers = #tpu.dot_dimension_numbers<[1], [0], [0], [1], [0, 0, 1, 1], [], []>} : vector<8x32xf32>, vector<32x96xf32>, vector<8x96xf32> -> vector<8x96xf32>
      %200 = vector.extract_strided_slice %199 {offsets = [0, 0], sizes = [8, 32], strides = [1, 1]} : vector<8x96xf32> to vector<8x32xf32>
      %c0_103 = arith.constant 0 : index
      %c0_104 = arith.constant 0 : index
      %201 = vector.load %arg17[%c0_103, %c0_104] : memref<8x32xf32, #tpu.memory_space<vmem>>, vector<8x32xf32>
      tpu.vector_store %arg17[%c0_103, %c0_104], %200 {strides = array<i32>} : memref<8x32xf32, #tpu.memory_space<vmem>>, vector<8x32xf32>,
      %202 = vector.extract_strided_slice %199 {offsets = [0, 32], sizes = [8, 32], strides = [1, 1]} : vector<8x96xf32> to vector<8x32xf32>
      %c0_105 = arith.constant 0 : index
      %c0_106 = arith.constant 0 : index
      %203 = vector.load %arg18[%c0_105, %c0_106] : memref<8x32xf32, #tpu.memory_space<vmem>>, vector<8x32xf32>
      tpu.vector_store %arg18[%c0_105, %c0_106], %202 {strides = array<i32>} : memref<8x32xf32, #tpu.memory_space<vmem>>, vector<8x32xf32>,
      %204 = vector.extract_strided_slice %199 {offsets = [0, 64], sizes = [8, 32], strides = [1, 1]} : vector<8x96xf32> to vector<8x32xf32>
      %c0_107 = arith.constant 0 : index
      %c0_108 = arith.constant 0 : index
      %205 = vector.load %arg19[%c0_107, %c0_108] : memref<8x32xf32, #tpu.memory_space<vmem>>, vector<8x32xf32>
      tpu.vector_store %arg19[%c0_107, %c0_108], %204 {strides = array<i32>} : memref<8x32xf32, #tpu.memory_space<vmem>>, vector<8x32xf32>,
    } else {
    }
    %c8_i32 = arith.constant 8 : i32
    %3 = arith.muli %arg1, %c8_i32 : i32
    %4 = tpu.assume_multiple %3, 8 : i32
    %c0 = arith.constant 0 : index
    %5 = arith.index_cast %4 : i32 to index
    %c0_1 = arith.constant 0 : index
    %6 = vector.load %arg2[%c0, %5, %c0_1] : memref<1x8x32xf32, #tpu.memory_space<vmem>>, vector<1x8x32xf32>
    %7 = vector.shape_cast %6 : vector<1x8x32xf32> to vector<8x32xf32>
    %c0_2 = arith.constant 0 : index
    %8 = arith.index_cast %4 : i32 to index
    %c0_3 = arith.constant 0 : index
    %9 = vector.load %arg3[%c0_2, %8, %c0_3] : memref<1x8x1xf32, #tpu.memory_space<vmem>>, vector<1x8x1xf32>
    %10 = vector.shape_cast %9 : vector<1x8x1xf32> to vector<8x1xf32>
    %11 = vector.shape_cast %10 : vector<8x1xf32> to vector<8x1xf32>
    %12 = vector.broadcast %11 : vector<8x1xf32> to vector<8x32xf32>
    %13 = arith.index_cast %4 : i32 to index
    %c0_4 = arith.constant 0 : index
    %14 = vector.load %arg17[%13, %c0_4] : memref<8x32xf32, #tpu.memory_space<vmem>>, vector<8x32xf32>
    %cst = arith.constant 0.000000e+00 : f32
    %15 = vector.broadcast %cst : f32 to vector<8x32xf32>
    %16 = vector.extract_strided_slice %14 {offsets = [0, 0], sizes = [8, 8], strides = [1, 1]} : vector<8x32xf32> to vector<8x8xf32>
    %c0_5 = arith.constant 0 : index
    %c0_6 = arith.constant 0 : index
    %17 = vector.load %arg18[%c0_5, %c0_6] : memref<8x32xf32, #tpu.memory_space<vmem>>, vector<8x8xf32>
    %c0_7 = arith.constant 0 : index
    %c0_8 = arith.constant 0 : index
    %18 = vector.load %arg19[%c0_7, %c0_8] : memref<8x32xf32, #tpu.memory_space<vmem>>, vector<8x8xf32>
    %cst_9 = arith.constant dense<0.000000e+00> : vector<8x8xf32>
    %19 = tpu.matmul %16, %17, %cst_9 {dimension_numbers = #tpu.dot_dimension_numbers<[1], [1], [0], [0], [0, 0, 1, 0], [], []>} : vector<8x8xf32>, vector<8x8xf32>, vector<8x8xf32> -> vector<8x8xf32>
    %cst_10 = arith.constant 0.353553385 : f32
    %20 = vector.broadcast %cst_10 : f32 to vector<8x8xf32>
    %21 = arith.mulf %19, %20 : vector<8x8xf32>
    %cst_11 = arith.constant dense<0xFF800000> : vector<8xf32>
    %22 = vector.multi_reduction <maximumf>, %21, %cst_11 [1] : vector<8x8xf32> to vector<8xf32>
    %23 = vector.shape_cast %22 : vector<8xf32> to vector<8x1xf32>
    %24 = vector.broadcast %23 : vector<8x1xf32> to vector<8x8xf32>
    %25 = arith.subf %21, %24 : vector<8x8xf32>
    %26 = math.exp %25 : vector<8x8xf32>
    %cst_12 = arith.constant dense<0.000000e+00> : vector<8xf32>
    %27 = vector.multi_reduction <add>, %26, %cst_12 [1] : vector<8x8xf32> to vector<8xf32>
    %28 = vector.shape_cast %27 : vector<8xf32> to vector<8x1xf32>
    %29 = tpu.reciprocal %28 {approx = true} : vector<8x1xf32> -> vector<8x1xf32>
    %30 = vector.broadcast %29 : vector<8x1xf32> to vector<8x8xf32>
    %31 = arith.mulf %26, %30 : vector<8x8xf32>
    %cst_13 = arith.constant dense<0.000000e+00> : vector<8x8xf32>
    %32 = tpu.matmul %31, %18, %cst_13 {dimension_numbers = #tpu.dot_dimension_numbers<[1], [0], [0], [1], [0, 0, 1, 1], [], []>} : vector<8x8xf32>, vector<8x8xf32>, vector<8x8xf32> -> vector<8x8xf32>
    %c0_14 = arith.constant 0 : index
    %c0_15 = arith.constant 0 : index
    %33 = vector.load %arg7[%c0_14, %c0_15] : memref<32x32xf32, #tpu.memory_space<vmem>>, vector<8x32xf32>
    %cst_16 = arith.constant dense<0.000000e+00> : vector<8x32xf32>
    %34 = tpu.matmul %32, %33, %cst_16 {dimension_numbers = #tpu.dot_dimension_numbers<[1], [0], [0], [1], [0, 0, 1, 1], [], []>} : vector<8x8xf32>, vector<8x32xf32>, vector<8x32xf32> -> vector<8x32xf32>
    %35 = arith.addf %15, %34 : vector<8x32xf32>
    %36 = vector.extract_strided_slice %14 {offsets = [0, 8], sizes = [8, 8], strides = [1, 1]} : vector<8x32xf32> to vector<8x8xf32>
    %c0_17 = arith.constant 0 : index
    %c8 = arith.constant 8 : index
    %37 = vector.load %arg18[%c0_17, %c8] : memref<8x32xf32, #tpu.memory_space<vmem>>, vector<8x8xf32>
    %c0_18 = arith.constant 0 : index
    %c8_19 = arith.constant 8 : index
    %38 = vector.load %arg19[%c0_18, %c8_19] : memref<8x32xf32, #tpu.memory_space<vmem>>, vector<8x8xf32>
    %cst_20 = arith.constant dense<0.000000e+00> : vector<8x8xf32>
    %39 = tpu.matmul %36, %37, %cst_20 {dimension_numbers = #tpu.dot_dimension_numbers<[1], [1], [0], [0], [0, 0, 1, 0], [], []>} : vector<8x8xf32>, vector<8x8xf32>, vector<8x8xf32> -> vector<8x8xf32>
    %cst_21 = arith.constant 0.353553385 : f32
    %40 = vector.broadcast %cst_21 : f32 to vector<8x8xf32>
    %41 = arith.mulf %39, %40 : vector<8x8xf32>
    %cst_22 = arith.constant dense<0xFF800000> : vector<8xf32>
    %42 = vector.multi_reduction <maximumf>, %41, %cst_22 [1] : vector<8x8xf32> to vector<8xf32>
    %43 = vector.shape_cast %42 : vector<8xf32> to vector<8x1xf32>
    %44 = vector.broadcast %43 : vector<8x1xf32> to vector<8x8xf32>
    %45 = arith.subf %41, %44 : vector<8x8xf32>
    %46 = math.exp %45 : vector<8x8xf32>
    %cst_23 = arith.constant dense<0.000000e+00> : vector<8xf32>
    %47 = vector.multi_reduction <add>, %46, %cst_23 [1] : vector<8x8xf32> to vector<8xf32>
    %48 = vector.shape_cast %47 : vector<8xf32> to vector<8x1xf32>
    %49 = tpu.reciprocal %48 {approx = true} : vector<8x1xf32> -> vector<8x1xf32>
    %50 = vector.broadcast %49 : vector<8x1xf32> to vector<8x8xf32>
    %51 = arith.mulf %46, %50 : vector<8x8xf32>
    %cst_24 = arith.constant dense<0.000000e+00> : vector<8x8xf32>
    %52 = tpu.matmul %51, %38, %cst_24 {dimension_numbers = #tpu.dot_dimension_numbers<[1], [0], [0], [1], [0, 0, 1, 1], [], []>} : vector<8x8xf32>, vector<8x8xf32>, vector<8x8xf32> -> vector<8x8xf32>
    %c8_25 = arith.constant 8 : index
    %c0_26 = arith.constant 0 : index
    %53 = vector.load %arg7[%c8_25, %c0_26] : memref<32x32xf32, #tpu.memory_space<vmem>>, vector<8x32xf32>
    %cst_27 = arith.constant dense<0.000000e+00> : vector<8x32xf32>
    %54 = tpu.matmul %52, %53, %cst_27 {dimension_numbers = #tpu.dot_dimension_numbers<[1], [0], [0], [1], [0, 0, 1, 1], [], []>} : vector<8x8xf32>, vector<8x32xf32>, vector<8x32xf32> -> vector<8x32xf32>
    %55 = arith.addf %35, %54 : vector<8x32xf32>
    %56 = vector.extract_strided_slice %14 {offsets = [0, 16], sizes = [8, 8], strides = [1, 1]} : vector<8x32xf32> to vector<8x8xf32>
    %c0_28 = arith.constant 0 : index
    %c16 = arith.constant 16 : index
    %57 = vector.load %arg18[%c0_28, %c16] : memref<8x32xf32, #tpu.memory_space<vmem>>, vector<8x8xf32>
    %c0_29 = arith.constant 0 : index
    %c16_30 = arith.constant 16 : index
    %58 = vector.load %arg19[%c0_29, %c16_30] : memref<8x32xf32, #tpu.memory_space<vmem>>, vector<8x8xf32>
    %cst_31 = arith.constant dense<0.000000e+00> : vector<8x8xf32>
    %59 = tpu.matmul %56, %57, %cst_31 {dimension_numbers = #tpu.dot_dimension_numbers<[1], [1], [0], [0], [0, 0, 1, 0], [], []>} : vector<8x8xf32>, vector<8x8xf32>, vector<8x8xf32> -> vector<8x8xf32>
    %cst_32 = arith.constant 0.353553385 : f32
    %60 = vector.broadcast %cst_32 : f32 to vector<8x8xf32>
    %61 = arith.mulf %59, %60 : vector<8x8xf32>
    %cst_33 = arith.constant dense<0xFF800000> : vector<8xf32>
    %62 = vector.multi_reduction <maximumf>, %61, %cst_33 [1] : vector<8x8xf32> to vector<8xf32>
    %63 = vector.shape_cast %62 : vector<8xf32> to vector<8x1xf32>
    %64 = vector.broadcast %63 : vector<8x1xf32> to vector<8x8xf32>
    %65 = arith.subf %61, %64 : vector<8x8xf32>
    %66 = math.exp %65 : vector<8x8xf32>
    %cst_34 = arith.constant dense<0.000000e+00> : vector<8xf32>
    %67 = vector.multi_reduction <add>, %66, %cst_34 [1] : vector<8x8xf32> to vector<8xf32>
    %68 = vector.shape_cast %67 : vector<8xf32> to vector<8x1xf32>
    %69 = tpu.reciprocal %68 {approx = true} : vector<8x1xf32> -> vector<8x1xf32>
    %70 = vector.broadcast %69 : vector<8x1xf32> to vector<8x8xf32>
    %71 = arith.mulf %66, %70 : vector<8x8xf32>
    %cst_35 = arith.constant dense<0.000000e+00> : vector<8x8xf32>
    %72 = tpu.matmul %71, %58, %cst_35 {dimension_numbers = #tpu.dot_dimension_numbers<[1], [0], [0], [1], [0, 0, 1, 1], [], []>} : vector<8x8xf32>, vector<8x8xf32>, vector<8x8xf32> -> vector<8x8xf32>
    %c16_36 = arith.constant 16 : index
    %c0_37 = arith.constant 0 : index
    %73 = vector.load %arg7[%c16_36, %c0_37] : memref<32x32xf32, #tpu.memory_space<vmem>>, vector<8x32xf32>
    %cst_38 = arith.constant dense<0.000000e+00> : vector<8x32xf32>
    %74 = tpu.matmul %72, %73, %cst_38 {dimension_numbers = #tpu.dot_dimension_numbers<[1], [0], [0], [1], [0, 0, 1, 1], [], []>} : vector<8x8xf32>, vector<8x32xf32>, vector<8x32xf32> -> vector<8x32xf32>
    %75 = arith.addf %55, %74 : vector<8x32xf32>
    %76 = vector.extract_strided_slice %14 {offsets = [0, 24], sizes = [8, 8], strides = [1, 1]} : vector<8x32xf32> to vector<8x8xf32>
    %c0_39 = arith.constant 0 : index
    %c24 = arith.constant 24 : index
    %77 = vector.load %arg18[%c0_39, %c24] : memref<8x32xf32, #tpu.memory_space<vmem>>, vector<8x8xf32>
    %c0_40 = arith.constant 0 : index
    %c24_41 = arith.constant 24 : index
    %78 = vector.load %arg19[%c0_40, %c24_41] : memref<8x32xf32, #tpu.memory_space<vmem>>, vector<8x8xf32>
    %cst_42 = arith.constant dense<0.000000e+00> : vector<8x8xf32>
    %79 = tpu.matmul %76, %77, %cst_42 {dimension_numbers = #tpu.dot_dimension_numbers<[1], [1], [0], [0], [0, 0, 1, 0], [], []>} : vector<8x8xf32>, vector<8x8xf32>, vector<8x8xf32> -> vector<8x8xf32>
    %cst_43 = arith.constant 0.353553385 : f32
    %80 = vector.broadcast %cst_43 : f32 to vector<8x8xf32>
    %81 = arith.mulf %79, %80 : vector<8x8xf32>
    %cst_44 = arith.constant dense<0xFF800000> : vector<8xf32>
    %82 = vector.multi_reduction <maximumf>, %81, %cst_44 [1] : vector<8x8xf32> to vector<8xf32>
    %83 = vector.shape_cast %82 : vector<8xf32> to vector<8x1xf32>
    %84 = vector.broadcast %83 : vector<8x1xf32> to vector<8x8xf32>
    %85 = arith.subf %81, %84 : vector<8x8xf32>
    %86 = math.exp %85 : vector<8x8xf32>
    %cst_45 = arith.constant dense<0.000000e+00> : vector<8xf32>
    %87 = vector.multi_reduction <add>, %86, %cst_45 [1] : vector<8x8xf32> to vector<8xf32>
    %88 = vector.shape_cast %87 : vector<8xf32> to vector<8x1xf32>
    %89 = tpu.reciprocal %88 {approx = true} : vector<8x1xf32> -> vector<8x1xf32>
    %90 = vector.broadcast %89 : vector<8x1xf32> to vector<8x8xf32>
    %91 = arith.mulf %86, %90 : vector<8x8xf32>
    %cst_46 = arith.constant dense<0.000000e+00> : vector<8x8xf32>
    %92 = tpu.matmul %91, %78, %cst_46 {dimension_numbers = #tpu.dot_dimension_numbers<[1], [0], [0], [1], [0, 0, 1, 1], [], []>} : vector<8x8xf32>, vector<8x8xf32>, vector<8x8xf32> -> vector<8x8xf32>
    %c24_47 = arith.constant 24 : index
    %c0_48 = arith.constant 0 : index
    %93 = vector.load %arg7[%c24_47, %c0_48] : memref<32x32xf32, #tpu.memory_space<vmem>>, vector<8x32xf32>
    %cst_49 = arith.constant dense<0.000000e+00> : vector<8x32xf32>
    %94 = tpu.matmul %92, %93, %cst_49 {dimension_numbers = #tpu.dot_dimension_numbers<[1], [0], [0], [1], [0, 0, 1, 1], [], []>} : vector<8x8xf32>, vector<8x32xf32>, vector<8x32xf32> -> vector<8x32xf32>
    %95 = arith.addf %75, %94 : vector<8x32xf32>
    %96 = arith.mulf %95, %12 : vector<8x32xf32>
    %97 = arith.addf %7, %96 : vector<8x32xf32>
    %c0_50 = arith.constant 0 : index
    %c0_51 = arith.constant 0 : index
    %98 = vector.load %arg8[%c0_50, %c0_51] : memref<1x32xf32, #tpu.memory_space<vmem>>, vector<1x32xf32>
    %c0_52 = arith.constant 0 : index
    %c0_53 = arith.constant 0 : index
    %99 = vector.load %arg9[%c0_52, %c0_53] : memref<1x32xf32, #tpu.memory_space<vmem>>, vector<1x32xf32>
    %cst_54 = arith.constant dense<0.000000e+00> : vector<8xf32>
    %100 = vector.multi_reduction <add>, %97, %cst_54 [1] : vector<8x32xf32> to vector<8xf32>
    %101 = vector.shape_cast %100 : vector<8xf32> to vector<8x1xf32>
    %cst_55 = arith.constant 3.200000e+01 : f32
    %102 = vector.broadcast %cst_55 : f32 to vector<8x1xf32>
    %103 = arith.divf %101, %102 : vector<8x1xf32>
    %104 = vector.broadcast %103 : vector<8x1xf32> to vector<8x32xf32>
    %105 = arith.subf %97, %104 : vector<8x32xf32>
    %106 = arith.mulf %105, %105 : vector<8x32xf32>
    %cst_56 = arith.constant dense<0.000000e+00> : vector<8xf32>
    %107 = vector.multi_reduction <add>, %106, %cst_56 [1] : vector<8x32xf32> to vector<8xf32>
    %108 = vector.shape_cast %107 : vector<8xf32> to vector<8x1xf32>
    %cst_57 = arith.constant 3.200000e+01 : f32
    %109 = vector.broadcast %cst_57 : f32 to vector<8x1xf32>
    %110 = arith.divf %108, %109 : vector<8x1xf32>
    %cst_58 = arith.constant 9.99999974E-6 : f32
    %111 = vector.broadcast %cst_58 : f32 to vector<8x1xf32>
    %112 = arith.addf %110, %111 : vector<8x1xf32>
    %113 = math.rsqrt %112 : vector<8x1xf32>
    %114 = vector.broadcast %113 : vector<8x1xf32> to vector<8x32xf32>
    %115 = arith.mulf %105, %114 : vector<8x32xf32>
    %116 = vector.broadcast %98 : vector<1x32xf32> to vector<8x32xf32>
    %117 = arith.mulf %115, %116 : vector<8x32xf32>
    %118 = vector.broadcast %99 : vector<1x32xf32> to vector<8x32xf32>
    %119 = arith.addf %117, %118 : vector<8x32xf32>
    %c0_59 = arith.constant 0 : index
    %c0_60 = arith.constant 0 : index
    %120 = vector.load %arg10[%c0_59, %c0_60] : memref<32x128xf32, #tpu.memory_space<vmem>>, vector<32x128xf32>
    %cst_61 = arith.constant dense<0.000000e+00> : vector<8x128xf32>
    %121 = tpu.matmul %119, %120, %cst_61 {dimension_numbers = #tpu.dot_dimension_numbers<[1], [0], [0], [1], [0, 0, 1, 1], [], []>} : vector<8x32xf32>, vector<32x128xf32>, vector<8x128xf32> -> vector<8x128xf32>
    %c0_62 = arith.constant 0 : index
    %c0_63 = arith.constant 0 : index
    %122 = vector.load %arg11[%c0_62, %c0_63] : memref<1x128xf32, #tpu.memory_space<vmem>>, vector<1x128xf32>
    %123 = vector.broadcast %122 : vector<1x128xf32> to vector<8x128xf32>
    %124 = arith.addf %121, %123 : vector<8x128xf32>
    %cst_64 = arith.constant 5.000000e-01 : f32
    %125 = vector.broadcast %cst_64 : f32 to vector<8x128xf32>
    %126 = arith.mulf %125, %124 : vector<8x128xf32>
    %cst_65 = arith.constant 4.471500e-02 : f32
    %127 = vector.broadcast %cst_65 : f32 to vector<8x128xf32>
    %128 = arith.mulf %127, %124 : vector<8x128xf32>
    %129 = arith.mulf %128, %124 : vector<8x128xf32>
    %130 = arith.mulf %129, %124 : vector<8x128xf32>
    %131 = arith.addf %124, %130 : vector<8x128xf32>
    %cst_66 = arith.constant 0.797884583 : f32
    %132 = vector.broadcast %cst_66 : f32 to vector<8x128xf32>
    %133 = arith.mulf %132, %131 : vector<8x128xf32>
    %134 = math.tanh %133 : vector<8x128xf32>
    %cst_67 = arith.constant 1.000000e+00 : f32
    %135 = vector.broadcast %cst_67 : f32 to vector<8x128xf32>
    %136 = arith.addf %135, %134 : vector<8x128xf32>
    %137 = arith.mulf %126, %136 : vector<8x128xf32>
    %c0_68 = arith.constant 0 : index
    %c0_69 = arith.constant 0 : index
    %138 = vector.load %arg12[%c0_68, %c0_69] : memref<1x128xf32, #tpu.memory_space<vmem>>, vector<1x128xf32>
    %c0_70 = arith.constant 0 : index
    %c0_71 = arith.constant 0 : index
    %139 = vector.load %arg13[%c0_70, %c0_71] : memref<1x128xf32, #tpu.memory_space<vmem>>, vector<1x128xf32>
    %cst_72 = arith.constant dense<0.000000e+00> : vector<8xf32>
    %140 = vector.multi_reduction <add>, %137, %cst_72 [1] : vector<8x128xf32> to vector<8xf32>
    %141 = vector.shape_cast %140 : vector<8xf32> to vector<8x1xf32>
    %cst_73 = arith.constant 1.280000e+02 : f32
    %142 = vector.broadcast %cst_73 : f32 to vector<8x1xf32>
    %143 = arith.divf %141, %142 : vector<8x1xf32>
    %144 = vector.broadcast %143 : vector<8x1xf32> to vector<8x128xf32>
    %145 = arith.subf %137, %144 : vector<8x128xf32>
    %146 = arith.mulf %145, %145 : vector<8x128xf32>
    %cst_74 = arith.constant dense<0.000000e+00> : vector<8xf32>
    %147 = vector.multi_reduction <add>, %146, %cst_74 [1] : vector<8x128xf32> to vector<8xf32>
    %148 = vector.shape_cast %147 : vector<8xf32> to vector<8x1xf32>
    %cst_75 = arith.constant 1.280000e+02 : f32
    %149 = vector.broadcast %cst_75 : f32 to vector<8x1xf32>
    %150 = arith.divf %148, %149 : vector<8x1xf32>
    %cst_76 = arith.constant 9.99999974E-6 : f32
    %151 = vector.broadcast %cst_76 : f32 to vector<8x1xf32>
    %152 = arith.addf %150, %151 : vector<8x1xf32>
    %153 = math.rsqrt %152 : vector<8x1xf32>
    %154 = vector.broadcast %153 : vector<8x1xf32> to vector<8x128xf32>
    %155 = arith.mulf %145, %154 : vector<8x128xf32>
    %156 = vector.broadcast %138 : vector<1x128xf32> to vector<8x128xf32>
    %157 = arith.mulf %155, %156 : vector<8x128xf32>
    %158 = vector.broadcast %139 : vector<1x128xf32> to vector<8x128xf32>
    %159 = arith.addf %157, %158 : vector<8x128xf32>
    %c0_77 = arith.constant 0 : index
    %c0_78 = arith.constant 0 : index
    %160 = vector.load %arg14[%c0_77, %c0_78] : memref<128x32xf32, #tpu.memory_space<vmem>>, vector<128x32xf32>
    %cst_79 = arith.constant dense<0.000000e+00> : vector<8x32xf32>
    %161 = tpu.matmul %159, %160, %cst_79 {dimension_numbers = #tpu.dot_dimension_numbers<[1], [0], [0], [1], [0, 0, 1, 1], [], []>} : vector<8x128xf32>, vector<128x32xf32>, vector<8x32xf32> -> vector<8x32xf32>
    %c0_80 = arith.constant 0 : index
    %c0_81 = arith.constant 0 : index
    %162 = vector.load %arg15[%c0_80, %c0_81] : memref<1x32xf32, #tpu.memory_space<vmem>>, vector<1x32xf32>
    %163 = vector.broadcast %162 : vector<1x32xf32> to vector<8x32xf32>
    %164 = arith.addf %161, %163 : vector<8x32xf32>
    %165 = arith.mulf %164, %12 : vector<8x32xf32>
    %166 = arith.addf %97, %165 : vector<8x32xf32>
    %c0_82 = arith.constant 0 : index
    %c0_83 = arith.constant 0 : index
    %c0_84 = arith.constant 0 : index
    %167 = vector.load %arg16[%c0_82, %c0_83, %c0_84] : memref<1x8x32xf32, #tpu.memory_space<vmem>>, vector<1x8x32xf32>
    %168 = vector.shape_cast %167 : vector<1x8x32xf32> to vector<8x32xf32>
    %169 = vector.shape_cast %166 : vector<8x32xf32> to vector<1x8x32xf32>
    tpu.vector_store %arg16[%c0_82, %c0_83, %c0_84], %169 {strides = array<i32>} : memref<1x8x32xf32, #tpu.memory_space<vmem>>, vector<1x8x32xf32>,
    return
  }
  func.func @transform_0(%arg0: i32, %arg1: i32) -> (i32, i32, i32) {
    %c0_i32 = arith.constant 0 : i32
    %c0_i32_0 = arith.constant 0 : i32
    %c0_i32_1 = arith.constant 0 : i32
    return %arg0, %c0_i32, %c0_i32_0 : i32, i32, i32
  }
  func.func @transform_1(%arg0: i32, %arg1: i32) -> (i32, i32, i32) {
    %c0_i32 = arith.constant 0 : i32
    %c0_i32_0 = arith.constant 0 : i32
    %c0_i32_1 = arith.constant 0 : i32
    return %arg0, %c0_i32, %c0_i32_0 : i32, i32, i32
  }
  func.func @transform_2(%arg0: i32, %arg1: i32) -> (i32, i32) {
    %c0_i32 = arith.constant 0 : i32
    %c0_i32_0 = arith.constant 0 : i32
    %c0_i32_1 = arith.constant 0 : i32
    return %c0_i32, %c0_i32_0 : i32, i32
  }
  func.func @transform_3(%arg0: i32, %arg1: i32) -> (i32, i32) {
    %c0_i32 = arith.constant 0 : i32
    %c0_i32_0 = arith.constant 0 : i32
    %c0_i32_1 = arith.constant 0 : i32
    return %c0_i32, %c0_i32_0 : i32, i32
  }
  func.func @transform_4(%arg0: i32, %arg1: i32) -> (i32, i32) {
    %c0_i32 = arith.constant 0 : i32
    %c0_i32_0 = arith.constant 0 : i32
    %c0_i32_1 = arith.constant 0 : i32
    return %c0_i32, %c0_i32_0 : i32, i32
  }
  func.func @transform_5(%arg0: i32, %arg1: i32) -> (i32, i32) {
    %c0_i32 = arith.constant 0 : i32
    %c0_i32_0 = arith.constant 0 : i32
    %c0_i32_1 = arith.constant 0 : i32
    return %c0_i32, %c0_i32_0 : i32, i32
  }
  func.func @transform_6(%arg0: i32, %arg1: i32) -> (i32, i32) {
    %c0_i32 = arith.constant 0 : i32
    %c0_i32_0 = arith.constant 0 : i32
    %c0_i32_1 = arith.constant 0 : i32
    return %c0_i32, %c0_i32_0 : i32, i32
  }
  func.func @transform_7(%arg0: i32, %arg1: i32) -> (i32, i32) {
    %c0_i32 = arith.constant 0 : i32
    %c0_i32_0 = arith.constant 0 : i32
    %c0_i32_1 = arith.constant 0 : i32
    return %c0_i32, %c0_i32_0 : i32, i32
  }
  func.func @transform_8(%arg0: i32, %arg1: i32) -> (i32, i32) {
    %c0_i32 = arith.constant 0 : i32
    %c0_i32_0 = arith.constant 0 : i32
    %c0_i32_1 = arith.constant 0 : i32
    return %c0_i32, %c0_i32_0 : i32, i32
  }
  func.func @transform_9(%arg0: i32, %arg1: i32) -> (i32, i32) {
    %c0_i32 = arith.constant 0 : i32
    %c0_i32_0 = arith.constant 0 : i32
    %c0_i32_1 = arith.constant 0 : i32
    return %c0_i32, %c0_i32_0 : i32, i32
  }
  func.func @transform_10(%arg0: i32, %arg1: i32) -> (i32, i32) {
    %c0_i32 = arith.constant 0 : i32
    %c0_i32_0 = arith.constant 0 : i32
    %c0_i32_1 = arith.constant 0 : i32
    return %c0_i32, %c0_i32_0 : i32, i32
  }
  func.func @transform_11(%arg0: i32, %arg1: i32) -> (i32, i32) {
    %c0_i32 = arith.constant 0 : i32
    %c0_i32_0 = arith.constant 0 : i32
    %c0_i32_1 = arith.constant 0 : i32
    return %c0_i32, %c0_i32_0 : i32, i32
  }
  func.func @transform_12(%arg0: i32, %arg1: i32) -> (i32, i32) {
    %c0_i32 = arith.constant 0 : i32
    %c0_i32_0 = arith.constant 0 : i32
    %c0_i32_1 = arith.constant 0 : i32
    return %c0_i32, %c0_i32_0 : i32, i32
  }
  func.func @transform_13(%arg0: i32, %arg1: i32) -> (i32, i32) {
    %c0_i32 = arith.constant 0 : i32
    %c0_i32_0 = arith.constant 0 : i32
    %c0_i32_1 = arith.constant 0 : i32
    return %c0_i32, %c0_i32_0 : i32, i32
  }
  func.func @transform_14(%arg0: i32, %arg1: i32) -> (i32, i32, i32) {
    %c0_i32 = arith.constant 0 : i32
    %c0_i32_0 = arith.constant 0 : i32
    return %arg0, %arg1, %c0_i32 : i32, i32, i32
  }
}

</mosaic_0001>

<llo_original>
// kernel: tpu_custom_call.1
$region0: #{tpu_custom_call.1}
  #allocation0 [shape = 'u32[]', space=smem, size = 0x4, offset = 0x4, fixed_abs, tag = 'smem constant byte address 0x4 - core index']
  #allocation1 [shape = 'u32[144,128]{1,0:T(1,128)}', space=vmem, size = 0x12000, scoped, tag = 'internal scratch']
  #allocation2 [shape = 'f32[8,32]{1,0:T(8,128)}', space=vmem, size = 0x1000, scoped, tag = 'scratch operand']
  #allocation3 [shape = 'f32[8,32]{1,0:T(8,128)}', space=vmem, size = 0x1000, scoped, tag = 'scratch operand']
  #allocation4 [shape = 'f32[8,32]{1,0:T(8,128)}', space=vmem, size = 0x1000, scoped, tag = 'scratch operand']
  %s0 = inlined_call_operand.vmem [shape: f32[2,8,32], index: 0, kind: input, shape index: {}]
  %s1 = inlined_call_operand.vmem [shape: f32[2,8,1], index: 1, kind: input, shape index: {}]
  %s2 = inlined_call_operand.vmem [shape: f32[1,32], index: 2, kind: input, shape index: {}]
  %s3 = inlined_call_operand.vmem [shape: f32[1,32], index: 3, kind: input, shape index: {}]
  %s4 = inlined_call_operand.vmem [shape: f32[32,96], index: 4, kind: input, shape index: {}]
  %s5 = inlined_call_operand.vmem [shape: f32[32,32], index: 5, kind: input, shape index: {}]
  %s6 = inlined_call_operand.vmem [shape: f32[1,32], index: 6, kind: input, shape index: {}]
  %s7 = inlined_call_operand.vmem [shape: f32[1,32], index: 7, kind: input, shape index: {}]
  %s8 = inlined_call_operand.vmem [shape: f32[32,128], index: 8, kind: input, shape index: {}]
  %s9 = inlined_call_operand.vmem [shape: f32[1,128], index: 9, kind: input, shape index: {}]
  %s10 = inlined_call_operand.vmem [shape: f32[1,128], index: 10, kind: input, shape index: {}]
  %s11 = inlined_call_operand.vmem [shape: f32[1,128], index: 11, kind: input, shape index: {}]
  %s12 = inlined_call_operand.vmem [shape: f32[128,32], index: 12, kind: input, shape index: {}]
  %s13 = inlined_call_operand.vmem [shape: f32[1,32], index: 13, kind: input, shape index: {}]
  %s14 = inlined_call_operand.hbm [shape: f32[2,8,32], index: 14, kind: output, shape index: {}]
  %s15 = sld [smem:[#allocation0]]
  $region93: #{tpu_custom_call.1} parent=0
    _
  %s17 = ssub.s32 1, %s15
  %s18 = scalar_select 0, %s17, %s15
  $region1: #{tpu_custom_call.1} parent=0
    #allocation5 [shape = 'u8[8192]{0}', space=vmem, size = 0x2000, scoped, tag = 'output window, operand 0']
    #allocation6 [shape = 's32[2]{0}', space=sflag, size = 0x8, scoped, tag = 'scoped memory for tpu_custom_call.1']
    %19 = vsyncpa [#allocation6], 0
    %s20 = scalar_lea.sflag [#allocation6], 1
    %21 = vsyncpa %s20, 0
    loop: start=0, step=1, limit=4
    $region2: #{tpu_custom_call.1} parent=1 // loop_pre_header
      _
    $region3: #{tpu_custom_call.1} parent=1 // loop_header
      %s23 = sphi 0, %s27
      %p24 = scmp.ge.s32.totalorder %s23, 4
      %s30 = sphi 0, %s42
      %s31 = sphi 0, %s38
      %s32 = sphi 0, %s30
      %s33 = sphi 0, %s31
      %s34 = sphi 0, %s32
      %s35 = sphi 0, %s33
      %s45 = sphi 0, %s47
      %s48 = sphi 0, %s45
      %s49 = sphi 0, %s48
      %s65 = sphi 0, %s49
      %s71 = sphi 0, %s73
      %s74 = sphi 0, %s71
      %s75 = sphi 0, %s74
      %s91 = sphi 0, %s75
      %s95 = sphi 0, %s95
      %s97 = sphi 0, %s95
      %s98 = sphi 0, %s97
      %s112 = sphi 0, %s98
      %s116 = sphi 0, %s116
      %s118 = sphi 0, %s116
      %s119 = sphi 0, %s118
      %s133 = sphi 0, %s119
      %s137 = sphi 0, %s137
      %s139 = sphi 0, %s137
      %s140 = sphi 0, %s139
      %s154 = sphi 0, %s140
      %s158 = sphi 0, %s158
      %s160 = sphi 0, %s158
      %s161 = sphi 0, %s160
      %s175 = sphi 0, %s161
      %s179 = sphi 0, %s179
      %s181 = sphi 0, %s179
      %s182 = sphi 0, %s181
      %s196 = sphi 0, %s182
      %s200 = sphi 0, %s200
      %s202 = sphi 0, %s200
      %s203 = sphi 0, %s202
      %s217 = sphi 0, %s203
      %s221 = sphi 0, %s221
      %s223 = sphi 0, %s221
      %s224 = sphi 0, %s223
      %s238 = sphi 0, %s224
      %s242 = sphi 0, %s242
      %s244 = sphi 0, %s242
      %s245 = sphi 0, %s244
      %s259 = sphi 0, %s245
      %s263 = sphi 0, %s263
      %s265 = sphi 0, %s263
      %s266 = sphi 0, %s265
      %s280 = sphi 0, %s266
      %s284 = sphi 0, %s284
      %s286 = sphi 0, %s284
      %s287 = sphi 0, %s286
      %s301 = sphi 0, %s287
      %s305 = sphi 0, %s305
      %s307 = sphi 0, %s305
      %s308 = sphi 0, %s307
      %s322 = sphi 0, %s308
      %s326 = sphi 0, %s326
      %s328 = sphi 0, %s326
      %s329 = sphi 0, %s328
      %s343 = sphi 0, %s329
      %s351 = sphi 0, %s353
      %s354 = sphi 0, %s351
      %s355 = sphi 0, %s354
      %s371 = sphi 0, %s355
    $region4: #{tpu_custom_call.1} parent=1 // loop_header_branch
      %26 = sbr.rel (%p24) target = $region8
    $region5: #{tpu_custom_call.1} parent=1 // loop_body
      %s28 = ssub.s32 %s23, 1
      %s29 = ssub.s32 %s23, 2
      %s36 = sadd.s32 1, %s31
      %p37 = scmp.ge.s32.totalorder %s36, 1
      %s38 = scalar_select %p37, 0, %s36
      %s39 = sadd.s32 1, %s30
      %s40 = scalar_select %p37, %s39, %s30
      %p41 = scmp.ge.s32.totalorder %s40, 2
      %s42 = scalar_select %p41, 0, %s40
      %s43 = ssub.s32 %s30, %s42
      %p44 = scmp.eq.s32.totalorder %s43, 0
      %s46 = sadd.s32 %s45, 1
      %s47 = scalar_select %p44, %s45, %s46
      %p50 = pneg %p44
      %p51 = scmp.eq.s32.totalorder %s23, 1
      %p52 = por %p50, %p51
      %p53 = scmp.ne.s32.totalorder %s45, %s48
      %p54 = scmp.eq.s32.totalorder %s23, 0
      %p55 = por %p53, %p54
      %p56 = scmp.ne.s32.totalorder %s45, %s48
      %p57 = scmp.eq.s32.totalorder %s28, 1
      %p58 = por %p56, %p57
      %p59 = scmp.ne.s32.totalorder %s48, %s49
      %p60 = scmp.eq.s32.totalorder %s28, 0
      %p61 = por %p59, %p60
      %p62 = scmp.ne.s32.totalorder %s48, %s49
      %p63 = scmp.eq.s32.totalorder %s29, 1
      %p64 = por %p62, %p63
      %p66 = scmp.ne.s32.totalorder %s49, %s65
      %p67 = scmp.eq.s32.totalorder %s29, 0
      %p68 = por %p66, %p67
      %s69 = ssub.s32 %s30, %s42
      %p70 = scmp.eq.s32.totalorder %s69, 0
      %s72 = sadd.s32 %s71, 1
      %s73 = scalar_select %p70, %s71, %s72
      %p76 = pneg %p70
      %p77 = scmp.eq.s32.totalorder %s23, 1
      %p78 = por %p76, %p77
      %p79 = scmp.ne.s32.totalorder %s71, %s74
      %p80 = scmp.eq.s32.totalorder %s23, 0
      %p81 = por %p79, %p80
      %p82 = scmp.ne.s32.totalorder %s71, %s74
      %p83 = scmp.eq.s32.totalorder %s28, 1
      %p84 = por %p82, %p83
      %p85 = scmp.ne.s32.totalorder %s74, %s75
      %p86 = scmp.eq.s32.totalorder %s28, 0
      %p87 = por %p85, %p86
      %p88 = scmp.ne.s32.totalorder %s74, %s75
      %p89 = scmp.eq.s32.totalorder %s29, 1
      %p90 = por %p88, %p89
      %p92 = scmp.ne.s32.totalorder %s75, %s91
      %p93 = scmp.eq.s32.totalorder %s29, 0
      %p94 = por %p92, %p93
      %s96 = sadd.s32 %s95, 1
      %p99 = scmp.eq.s32.totalorder %s23, 1
      %p100 = scmp.ne.s32.totalorder %s95, %s97
      %p101 = scmp.eq.s32.totalorder %s23, 0
      %p102 = por %p100, %p101
      %p103 = scmp.ne.s32.totalorder %s95, %s97
      %p104 = scmp.eq.s32.totalorder %s28, 1
      %p105 = por %p103, %p104
      %p106 = scmp.ne.s32.totalorder %s97, %s98
      %p107 = scmp.eq.s32.totalorder %s28, 0
      %p108 = por %p106, %p107
      %p109 = scmp.ne.s32.totalorder %s97, %s98
      %p110 = scmp.eq.s32.totalorder %s29, 1
      %p111 = por %p109, %p110
      %p113 = scmp.ne.s32.totalorder %s98, %s112
      %p114 = scmp.eq.s32.totalorder %s29, 0
      %p115 = por %p113, %p114
      %s117 = sadd.s32 %s116, 1
      %p120 = scmp.eq.s32.totalorder %s23, 1
      %p121 = scmp.ne.s32.totalorder %s116, %s118
      %p122 = scmp.eq.s32.totalorder %s23, 0
      %p123 = por %p121, %p122
      %p124 = scmp.ne.s32.totalorder %s116, %s118
      %p125 = scmp.eq.s32.totalorder %s28, 1
      %p126 = por %p124, %p125
      %p127 = scmp.ne.s32.totalorder %s118, %s119
      %p128 = scmp.eq.s32.totalorder %s28, 0
      %p129 = por %p127, %p128
      %p130 = scmp.ne.s32.totalorder %s118, %s119
      %p131 = scmp.eq.s32.totalorder %s29, 1
      %p132 = por %p130, %p131
      %p134 = scmp.ne.s32.totalorder %s119, %s133
      %p135 = scmp.eq.s32.totalorder %s29, 0
      %p136 = por %p134, %p135
      %s138 = sadd.s32 %s137, 1
      %p141 = scmp.eq.s32.totalorder %s23, 1
      %p142 = scmp.ne.s32.totalorder %s137, %s139
      %p143 = scmp.eq.s32.totalorder %s23, 0
      %p144 = por %p142, %p143
      %p145 = scmp.ne.s32.totalorder %s137, %s139
      %p146 = scmp.eq.s32.totalorder %s28, 1
      %p147 = por %p145, %p146
      %p148 = scmp.ne.s32.totalorder %s139, %s140
      %p149 = scmp.eq.s32.totalorder %s28, 0
      %p150 = por %p148, %p149
      %p151 = scmp.ne.s32.totalorder %s139, %s140
      %p152 = scmp.eq.s32.totalorder %s29, 1
      %p153 = por %p151, %p152
      %p155 = scmp.ne.s32.totalorder %s140, %s154
      %p156 = scmp.eq.s32.totalorder %s29, 0
      %p157 = por %p155, %p156
      %s159 = sadd.s32 %s158, 1
      %p162 = scmp.eq.s32.totalorder %s23, 1
      %p163 = scmp.ne.s32.totalorder %s158, %s160
      %p164 = scmp.eq.s32.totalorder %s23, 0
      %p165 = por %p163, %p164
      %p166 = scmp.ne.s32.totalorder %s158, %s160
      %p167 = scmp.eq.s32.totalorder %s28, 1
      %p168 = por %p166, %p167
      %p169 = scmp.ne.s32.totalorder %s160, %s161
      %p170 = scmp.eq.s32.totalorder %s28, 0
      %p171 = por %p169, %p170
      %p172 = scmp.ne.s32.totalorder %s160, %s161
      %p173 = scmp.eq.s32.totalorder %s29, 1
      %p174 = por %p172, %p173
      %p176 = scmp.ne.s32.totalorder %s161, %s175
      %p177 = scmp.eq.s32.totalorder %s29, 0
      %p178 = por %p176, %p177
      %s180 = sadd.s32 %s179, 1
      %p183 = scmp.eq.s32.totalorder %s23, 1
      %p184 = scmp.ne.s32.totalorder %s179, %s181
      %p185 = scmp.eq.s32.totalorder %s23, 0
      %p186 = por %p184, %p185
      %p187 = scmp.ne.s32.totalorder %s179, %s181
      %p188 = scmp.eq.s32.totalorder %s28, 1
      %p189 = por %p187, %p188
      %p190 = scmp.ne.s32.totalorder %s181, %s182
      %p191 = scmp.eq.s32.totalorder %s28, 0
      %p192 = por %p190, %p191
      %p193 = scmp.ne.s32.totalorder %s181, %s182
      %p194 = scmp.eq.s32.totalorder %s29, 1
      %p195 = por %p193, %p194
      %p197 = scmp.ne.s32.totalorder %s182, %s196
      %p198 = scmp.eq.s32.totalorder %s29, 0
      %p199 = por %p197, %p198
      %s201 = sadd.s32 %s200, 1
      %p204 = scmp.eq.s32.totalorder %s23, 1
      %p205 = scmp.ne.s32.totalorder %s200, %s202
      %p206 = scmp.eq.s32.totalorder %s23, 0
      %p207 = por %p205, %p206
      %p208 = scmp.ne.s32.totalorder %s200, %s202
      %p209 = scmp.eq.s32.totalorder %s28, 1
      %p210 = por %p208, %p209
      %p211 = scmp.ne.s32.totalorder %s202, %s203
      %p212 = scmp.eq.s32.totalorder %s28, 0
      %p213 = por %p211, %p212
      %p214 = scmp.ne.s32.totalorder %s202, %s203
      %p215 = scmp.eq.s32.totalorder %s29, 1
      %p216 = por %p214, %p215
      %p218 = scmp.ne.s32.totalorder %s203, %s217
      %p219 = scmp.eq.s32.totalorder %s29, 0
      %p220 = por %p218, %p219
      %s222 = sadd.s32 %s221, 1
      %p225 = scmp.eq.s32.totalorder %s23, 1
      %p226 = scmp.ne.s32.totalorder %s221, %s223
      %p227 = scmp.eq.s32.totalorder %s23, 0
      %p228 = por %p226, %p227
      %p229 = scmp.ne.s32.totalorder %s221, %s223
      %p230 = scmp.eq.s32.totalorder %s28, 1
      %p231 = por %p229, %p230
      %p232 = scmp.ne.s32.totalorder %s223, %s224
      %p233 = scmp.eq.s32.totalorder %s28, 0
      %p234 = por %p232, %p233
      %p235 = scmp.ne.s32.totalorder %s223, %s224
      %p236 = scmp.eq.s32.totalorder %s29, 1
      %p237 = por %p235, %p236
      %p239 = scmp.ne.s32.totalorder %s224, %s238
      %p240 = scmp.eq.s32.totalorder %s29, 0
      %p241 = por %p239, %p240
      %s243 = sadd.s32 %s242, 1
      %p246 = scmp.eq.s32.totalorder %s23, 1
      %p247 = scmp.ne.s32.totalorder %s242, %s244
      %p248 = scmp.eq.s32.totalorder %s23, 0
      %p249 = por %p247, %p248
      %p250 = scmp.ne.s32.totalorder %s242, %s244
      %p251 = scmp.eq.s32.totalorder %s28, 1
      %p252 = por %p250, %p251
      %p253 = scmp.ne.s32.totalorder %s244, %s245
      %p254 = scmp.eq.s32.totalorder %s28, 0
      %p255 = por %p253, %p254
      %p256 = scmp.ne.s32.totalorder %s244, %s245
      %p257 = scmp.eq.s32.totalorder %s29, 1
      %p258 = por %p256, %p257
      %p260 = scmp.ne.s32.totalorder %s245, %s259
      %p261 = scmp.eq.s32.totalorder %s29, 0
      %p262 = por %p260, %p261
      %s264 = sadd.s32 %s263, 1
      %p267 = scmp.eq.s32.totalorder %s23, 1
      %p268 = scmp.ne.s32.totalorder %s263, %s265
      %p269 = scmp.eq.s32.totalorder %s23, 0
      %p270 = por %p268, %p269
      %p271 = scmp.ne.s32.totalorder %s263, %s265
      %p272 = scmp.eq.s32.totalorder %s28, 1
      %p273 = por %p271, %p272
      %p274 = scmp.ne.s32.totalorder %s265, %s266
      %p275 = scmp.eq.s32.totalorder %s28, 0
      %p276 = por %p274, %p275
      %p277 = scmp.ne.s32.totalorder %s265, %s266
      %p278 = scmp.eq.s32.totalorder %s29, 1
      %p279 = por %p277, %p278
      %p281 = scmp.ne.s32.totalorder %s266, %s280
      %p282 = scmp.eq.s32.totalorder %s29, 0
      %p283 = por %p281, %p282
      %s285 = sadd.s32 %s284, 1
      %p288 = scmp.eq.s32.totalorder %s23, 1
      %p289 = scmp.ne.s32.totalorder %s284, %s286
      %p290 = scmp.eq.s32.totalorder %s23, 0
      %p291 = por %p289, %p290
      %p292 = scmp.ne.s32.totalorder %s284, %s286
      %p293 = scmp.eq.s32.totalorder %s28, 1
      %p294 = por %p292, %p293
      %p295 = scmp.ne.s32.totalorder %s286, %s287
      %p296 = scmp.eq.s32.totalorder %s28, 0
      %p297 = por %p295, %p296
      %p298 = scmp.ne.s32.totalorder %s286, %s287
      %p299 = scmp.eq.s32.totalorder %s29, 1
      %p300 = por %p298, %p299
      %p302 = scmp.ne.s32.totalorder %s287, %s301
      %p303 = scmp.eq.s32.totalorder %s29, 0
      %p304 = por %p302, %p303
      %s306 = sadd.s32 %s305, 1
      %p309 = scmp.eq.s32.totalorder %s23, 1
      %p310 = scmp.ne.s32.totalorder %s305, %s307
      %p311 = scmp.eq.s32.totalorder %s23, 0
      %p312 = por %p310, %p311
      %p313 = scmp.ne.s32.totalorder %s305, %s307
      %p314 = scmp.eq.s32.totalorder %s28, 1
      %p315 = por %p313, %p314
      %p316 = scmp.ne.s32.totalorder %s307, %s308
      %p317 = scmp.eq.s32.totalorder %s28, 0
      %p318 = por %p316, %p317
      %p319 = scmp.ne.s32.totalorder %s307, %s308
      %p320 = scmp.eq.s32.totalorder %s29, 1
      %p321 = por %p319, %p320
      %p323 = scmp.ne.s32.totalorder %s308, %s322
      %p324 = scmp.eq.s32.totalorder %s29, 0
      %p325 = por %p323, %p324
      %s327 = sadd.s32 %s326, 1
      %p330 = scmp.eq.s32.totalorder %s23, 1
      %p331 = scmp.ne.s32.totalorder %s326, %s328
      %p332 = scmp.eq.s32.totalorder %s23, 0
      %p333 = por %p331, %p332
      %p334 = scmp.ne.s32.totalorder %s326, %s328
      %p335 = scmp.eq.s32.totalorder %s28, 1
      %p336 = por %p334, %p335
      %p337 = scmp.ne.s32.totalorder %s328, %s329
      %p338 = scmp.eq.s32.totalorder %s28, 0
      %p339 = por %p337, %p338
      %p340 = scmp.ne.s32.totalorder %s328, %s329
      %p341 = scmp.eq.s32.totalorder %s29, 1
      %p342 = por %p340, %p341
      %p344 = scmp.ne.s32.totalorder %s329, %s343
      %p345 = scmp.eq.s32.totalorder %s29, 0
      %p346 = por %p344, %p345
      %s347 = ssub.s32 %s30, %s42
      %s348 = ssub.s32 %s31, %s38
      %s349 = sor.u32 %s347, %s348
      %p350 = scmp.eq.s32.totalorder %s349, 0
      %s352 = sadd.s32 %s351, 1
      %s353 = scalar_select %p350, %s351, %s352
      %p356 = pneg %p350
      %p357 = scmp.eq.s32.totalorder %s23, 1
      %p358 = por %p356, %p357
      %p359 = scmp.ne.s32.totalorder %s351, %s354
      %p360 = scmp.eq.s32.totalorder %s23, 0
      %p361 = por %p359, %p360
      %p362 = scmp.ne.s32.totalorder %s351, %s354
      %p363 = scmp.eq.s32.totalorder %s28, 1
      %p364 = por %p362, %p363
      %p365 = scmp.ne.s32.totalorder %s354, %s355
      %p366 = scmp.eq.s32.totalorder %s28, 0
      %p367 = por %p365, %p366
      %p368 = scmp.ne.s32.totalorder %s354, %s355
      %p369 = scmp.eq.s32.totalorder %s29, 1
      %p370 = por %p368, %p369
      %p372 = scmp.ne.s32.totalorder %s355, %s371
      %p373 = scmp.eq.s32.totalorder %s29, 0
      %p374 = por %p372, %p373
      %p375 = scmp.le.s32.totalorder 1, %s23
      %p376 = scmp.lt.s32.totalorder %s23, 3
      %p377 = pnand %p375, %p376
      %p378 = pneg %p377
      // Predicated region
      $region9: #{tpu_custom_call.1} parent=5 // pred_check
        _
      $region10: #{tpu_custom_call.1} parent=5 // pred_check_branch
        %380 = sbr.rel (%p377) target = $region12
      $region11: #{tpu_custom_call.1} parent=5 // pred_region
        %s381 = ssub.s32 %s23, 1
        // Predicated region
        $region13: #{tpu_custom_call.1} parent=11 // pred_check
          %p382 = pneg %p108
        $region14: #{tpu_custom_call.1} parent=11 // pred_check_branch
          %384 = sbr.rel (%p382) target = $region16
        $region15: #{tpu_custom_call.1} parent=11 // pred_region
          _
        $region16: #{tpu_custom_call.1} parent=11 // pred_fallthru
          _
        // Predicated region
        $region17: #{tpu_custom_call.1} parent=11 // pred_check
          %p385 = pneg %p129
        $region18: #{tpu_custom_call.1} parent=11 // pred_check_branch
          %387 = sbr.rel (%p385) target = $region20
        $region19: #{tpu_custom_call.1} parent=11 // pred_region
          _
        $region20: #{tpu_custom_call.1} parent=11 // pred_fallthru
          _
        // Predicated region
        $region21: #{tpu_custom_call.1} parent=11 // pred_check
          %p388 = pneg %p150
        $region22: #{tpu_custom_call.1} parent=11 // pred_check_branch
          %390 = sbr.rel (%p388) target = $region24
        $region23: #{tpu_custom_call.1} parent=11 // pred_region
          _
        $region24: #{tpu_custom_call.1} parent=11 // pred_fallthru
          _
        // Predicated region
        $region25: #{tpu_custom_call.1} parent=11 // pred_check
          %p391 = pneg %p171
        $region26: #{tpu_custom_call.1} parent=11 // pred_check_branch
          %393 = sbr.rel (%p391) target = $region28
        $region27: #{tpu_custom_call.1} parent=11 // pred_region
          _
        $region28: #{tpu_custom_call.1} parent=11 // pred_fallthru
          _
        // Predicated region
        $region29: #{tpu_custom_call.1} parent=11 // pred_check
          %p394 = pneg %p192
        $region30: #{tpu_custom_call.1} parent=11 // pred_check_branch
          %396 = sbr.rel (%p394) target = $region32
        $region31: #{tpu_custom_call.1} parent=11 // pred_region
          _
        $region32: #{tpu_custom_call.1} parent=11 // pred_fallthru
          _
        // Predicated region
        $region33: #{tpu_custom_call.1} parent=11 // pred_check
          %p397 = pneg %p213
        $region34: #{tpu_custom_call.1} parent=11 // pred_check_branch
          %399 = sbr.rel (%p397) target = $region36
        $region35: #{tpu_custom_call.1} parent=11 // pred_region
          _
        $region36: #{tpu_custom_call.1} parent=11 // pred_fallthru
          _
        // Predicated region
        $region37: #{tpu_custom_call.1} parent=11 // pred_check
          %p400 = pneg %p234
        $region38: #{tpu_custom_call.1} parent=11 // pred_check_branch
          %402 = sbr.rel (%p400) target = $region40
        $region39: #{tpu_custom_call.1} parent=11 // pred_region
          _
        $region40: #{tpu_custom_call.1} parent=11 // pred_fallthru
          _
        // Predicated region
        $region41: #{tpu_custom_call.1} parent=11 // pred_check
          %p403 = pneg %p255
        $region42: #{tpu_custom_call.1} parent=11 // pred_check_branch
          %405 = sbr.rel (%p403) target = $region44
        $region43: #{tpu_custom_call.1} parent=11 // pred_region
          _
        $region44: #{tpu_custom_call.1} parent=11 // pred_fallthru
          _
        // Predicated region
        $region45: #{tpu_custom_call.1} parent=11 // pred_check
          %p406 = pneg %p276
        $region46: #{tpu_custom_call.1} parent=11 // pred_check_branch
          %408 = sbr.rel (%p406) target = $region48
        $region47: #{tpu_custom_call.1} parent=11 // pred_region
          _
        $region48: #{tpu_custom_call.1} parent=11 // pred_fallthru
          _
        // Predicated region
        $region49: #{tpu_custom_call.1} parent=11 // pred_check
          %p409 = pneg %p297
        $region50: #{tpu_custom_call.1} parent=11 // pred_check_branch
          %411 = sbr.rel (%p409) target = $region52
        $region51: #{tpu_custom_call.1} parent=11 // pred_region
          _
        $region52: #{tpu_custom_call.1} parent=11 // pred_fallthru
          _
        // Predicated region
        $region53: #{tpu_custom_call.1} parent=11 // pred_check
          %p412 = pneg %p318
        $region54: #{tpu_custom_call.1} parent=11 // pred_check_branch
          %414 = sbr.rel (%p412) target = $region56
        $region55: #{tpu_custom_call.1} parent=11 // pred_region
          _
        $region56: #{tpu_custom_call.1} parent=11 // pred_fallthru
          _
        // Predicated region
        $region57: #{tpu_custom_call.1} parent=11 // pred_check
          %p415 = pneg %p339
        $region58: #{tpu_custom_call.1} parent=11 // pred_check_branch
          %417 = sbr.rel (%p415) target = $region60
        $region59: #{tpu_custom_call.1} parent=11 // pred_region
          _
        $region60: #{tpu_custom_call.1} parent=11 // pred_fallthru
          _
      $region12: #{tpu_custom_call.1} parent=5 // pred_fallthru
        _
      %p418 = scmp.lt.s32.totalorder %s23, 2
      // Predicated region
      $region61: #{tpu_custom_call.1} parent=5 // pred_check
        %p419 = pneg %p418
      $region62: #{tpu_custom_call.1} parent=5 // pred_check_branch
        %421 = sbr.rel (%p419) target = $region64
      $region63: #{tpu_custom_call.1} parent=5 // pred_region
        // Predicated region
        $region65: #{tpu_custom_call.1} parent=63 // pred_check
          %p422 = pneg %p55
        $region66: #{tpu_custom_call.1} parent=63 // pred_check_branch
          %424 = sbr.rel (%p422) target = $region68
        $region67: #{tpu_custom_call.1} parent=63 // pred_region
          %p425 = scmp.lt.s32.totalorder %s30, 1
          %s426 = scalar_select %p425, %s30, 1
          %s427 = smul.addr %s426, 8
          %s428 = scalar_lea.vmem %s0, %s427
        $region68: #{tpu_custom_call.1} parent=63 // pred_fallthru
          _
        // Predicated region
        $region69: #{tpu_custom_call.1} parent=63 // pred_check
          %p429 = pneg %p81
        $region70: #{tpu_custom_call.1} parent=63 // pred_check_branch
          %431 = sbr.rel (%p429) target = $region72
        $region71: #{tpu_custom_call.1} parent=63 // pred_region
          %p432 = scmp.lt.s32.totalorder %s30, 1
          %s433 = scalar_select %p432, %s30, 1
          %s434 = smul.addr %s433, 8
          %s435 = scalar_lea.vmem %s1, %s434
        $region72: #{tpu_custom_call.1} parent=63 // pred_fallthru
          _
      $region64: #{tpu_custom_call.1} parent=5 // pred_fallthru
        _
      %p436 = scmp.le.s32.totalorder 1, %s23
      %p437 = scmp.lt.s32.totalorder %s23, 3
      %p438 = pnand %p436, %p437
      %p439 = pneg %p438
      // Predicated region
      $region73: #{tpu_custom_call.1} parent=5 // pred_check
        _
      $region74: #{tpu_custom_call.1} parent=5 // pred_check_branch
        %441 = sbr.rel (%p438) target = $region76
      $region75: #{tpu_custom_call.1} parent=5 // pred_region
        %s442 = ssub.s32 %s23, 1
        %p443 = scmp.lt.s32.totalorder %s32, 1
        %s444 = scalar_select %p443, %s32, 1
        %s445 = smul.addr %s444, 8
        %s446 = scalar_lea.vmem %s0, %s445
        %p447 = pneg %p61
        %p448 = pneg %p58
        %p449 = scmp.lt.s32.totalorder %s32, 1
        %s450 = scalar_select %p449, %s32, 1
        %s451 = smul.addr %s450, 8
        %s452 = scalar_lea.vmem %s1, %s451
        %p453 = pneg %p87
        %p454 = pneg %p84
        %p455 = pneg %p108
        %p456 = pneg %p105
        %p457 = pneg %p129
        %p458 = pneg %p126
        %p459 = pneg %p150
        %p460 = pneg %p147
        %p461 = pneg %p171
        %p462 = pneg %p168
        %p463 = pneg %p192
        %p464 = pneg %p189
        %p465 = pneg %p213
        %p466 = pneg %p210
        %p467 = pneg %p234
        %p468 = pneg %p231
        %p469 = pneg %p255
        %p470 = pneg %p252
        %p471 = pneg %p276
        %p472 = pneg %p273
        %p473 = pneg %p297
        %p474 = pneg %p294
        %p475 = pneg %p318
        %p476 = pneg %p315
        %p477 = pneg %p339
        %p478 = pneg %p336
        %p479 = pneg %p367
        %p480 = pneg %p364
        %s481 = sand.u32 %s354, 1
        %s482 = scalar_lea.sflag [#allocation6], %s481
        %s483 = sand.u32 %s354, 1
        %s484 = smul.addr %s483, 8
        %s485 = scalar_lea.vmem [#allocation5], %s484
        %p486 = scmp.lt.s32.totalorder %s32, 1
        %s487 = scalar_select %p486, %s32, 1
        %s488 = smul.addr %s487, 8
        %s489 = scalar_lea.vmem %s0, %s488
        %p490 = scmp.lt.s32.totalorder %s32, 1
        %s491 = scalar_select %p490, %s32, 1
        %s492 = smul.addr %s491, 8
        %s493 = scalar_lea.vmem %s1, %s492
        %p494 = scmp.eq.s32.totalorder %s33, 0
        // Predicated region
        $region77: #{tpu_custom_call.1} parent=75 // pred_check
          %p495 = pneg %p494
        $region78: #{tpu_custom_call.1} parent=75 // pred_check_branch
          %497 = sbr.rel (%p495) target = $region80
        $region79: #{tpu_custom_call.1} parent=75 // pred_region
          %v498 = vld [vmem:[%s489] sm:$0xff]
          %v499 = vld [vmem:[%s493] sm:$0xff]
          %501 = vset.pattern.permute.xlu0 0
          %502 = vperm.xlu0 %501, %v499
          %v503 = vpop.permute.xlu0 %502
          %v505 = vmul.f32 %v498, %v503
          %v506 = vld [vmem:[%s2] sm:$0x1]
          %v507 = vld [vmem:[%s3] sm:$0x1]
          %vm508 = vcmask 261120
          %v509 = vsel %vm508, %v505, 0.0
          %510 = vadd.xlane.f32.xlu0 %v509
          %v511 = vpop.xlane.xlu0 %510
          %v512 = vrcp.pop 32.0
          %v513 = vmul.f32 %v511, %v512
          %v514 = vsub.f32 %v505, %v513
          %v515 = vmul.f32 %v514, %v514
          %v516 = vsel %vm508, %v515, 0.0
          %517 = vadd.xlane.f32.xlu0 %v516
          %v518 = vpop.xlane.xlu0 %517
          %v519 = vmul.f32 %v518, %v512
          %v520 = vadd.f32 %v519, 1e-05
          %v521 = vrsqrt.pop %v520
          %v522 = vmul.f32 %v514, %v521
          %v524 = vlaneseq
          %v525 = vshrl.u32 %v524, 7
          %v526 = vsub.s32 0, %v525
          %v527 = vrot.slane %v506, %v526
          %v529 = vmul.f32 %v522, %v527
          %v531 = vlaneseq
          %v532 = vshrl.u32 %v531, 7
          %v533 = vsub.s32 0, %v532
          %v534 = vrot.slane %v507, %v533
          %v536 = vadd.f32 %v529, %v534
          %v537 = vld [vmem:[%s4] sm:$0xff]
          %v538 = vld [vmem:[%s4 + $0x8] sm:$0xff]
          %v539 = vld [vmem:[%s4 + $0x10] sm:$0xff]
          %v540 = vld [vmem:[%s4 + $0x18] sm:$0xff]
          %v542 = vsel %vm508, %v536, 0
          %544 = vmatprep.subr.mxu0 0.0
          %545 = vmatpush1.msra.mxu0 %v537
          %546 = vmatprep.subr.mxu0 0.0
          %547 = vmatpush1.msra.mxu0 %v538
          %548 = vmatprep.subr.mxu0 0.0
          %549 = vmatpush1.msra.mxu0 %v539
          %550 = vmatprep.subr.mxu0 0.0
          %551 = vmatpush1.msra.mxu0 %v540
          %552 = vmatprep.subr.mxu0 0.0
          %553 = vmatpush1.msra.mxu0 0.0
          %554 = vmatprep.subr.mxu0 0.0
          %555 = vmatpush1.msra.mxu0 0.0
          %556 = vmatprep.subr.mxu0 0.0
          %557 = vmatpush1.msra.mxu0 0.0
          %558 = vmatprep.subr.mxu0 0.0
          %559 = vmatpush1.msra.mxu0 0.0
          %560 = vmatprep.subr.mxu0 0.0
          %561 = vmatpush1.msra.mxu0 0.0
          %562 = vmatprep.subr.mxu0 0.0
          %563 = vmatpush1.msra.mxu0 0.0
          %564 = vmatprep.subr.mxu0 0.0
          %565 = vmatpush1.msra.mxu0 0.0
          %566 = vmatprep.subr.mxu0 0.0
          %567 = vmatpush1.msra.mxu0 0.0
          %568 = vmatprep.subr.mxu0 0.0
          %569 = vmatpush1.msra.mxu0 0.0
          %570 = vmatprep.subr.mxu0 0.0
          %571 = vmatpush1.msra.mxu0 0.0
          %572 = vmatprep.subr.mxu0 0.0
          %573 = vmatpush1.msra.mxu0 0.0
          %574 = vmatprep.subr.mxu0 0.0
          %575 = vmatpush1.msra.mxu0 0.0
          %576 = vmatprep.subr.mxu0 0.0
          %577 = vmatpush1.msra.mxu0 0.0
          %578 = vmatprep.subr.mxu0 0.0
          %579 = vmatpush1.msra.mxu0 0.0
          %580 = vmatprep.subr.mxu0 0.0
          %581 = vmatpush1.msra.mxu0 0.0
          %582 = vmatprep.subr.mxu0 0.0
          %583 = vmatpush1.msra.mxu0 0.0
          %584 = vmatprep.subr.mxu0 0.0
          %585 = vmatpush1.msra.mxu0 0.0
          %586 = vmatprep.subr.mxu0 0.0
          %587 = vmatpush1.msra.mxu0 0.0
          %588 = vmatprep.subr.mxu0 0.0
          %589 = vmatpush1.msra.mxu0 0.0
          %590 = vmatprep.subr.mxu0 0.0
          %591 = vmatpush1.msra.mxu0 0.0
          %592 = vmatprep.subr.mxu0 0.0
          %593 = vmatpush1.msra.mxu0 0.0
          %594 = vmatprep.subr.mxu0 0.0
          %595 = vmatpush1.msra.mxu0 0.0
          %596 = vmatprep.subr.mxu0 0.0
          %597 = vmatpush1.msra.mxu0 0.0
          %598 = vmatprep.subr.mxu0 0.0
          %599 = vmatpush1.msra.mxu0 0.0
          %600 = vmatprep.subr.mxu0 0.0
          %601 = vmatpush1.msra.mxu0 0.0
          %602 = vmatprep.subr.mxu0 0.0
          %603 = vmatpush1.msra.mxu0 0.0
          %604 = vmatprep.subr.mxu0 0.0
          %605 = vmatpush1.msra.mxu0 0.0
          %606 = vmatprep.subr.mxu0 0.0
          %607 = vmatpush1.msra.mxu0 0.0
          %608 = vmatprep.mubr.f32.mxu0 0.0
          %609 = vmatmul.mubr.f32.gmra.mrb[0].mxu0 %v542
          %v610 = vpop.f32.mrb[0].mxu0
          %v611 = vadd.f32 0.0, %v610
          %v612 = vpop.f32.mrb[0].mxu0
          %613 = vdwg.mxu0
          %614 = vst.msk [vmem:[#allocation2] sm:$0xff] %vm508, %v611
          %616 = vrot.lane.b32.xlu0 %v611, 96
          %v617 = vpop.permute.xlu0 %616
          %619 = vst.msk [vmem:[#allocation3] sm:$0xff] %vm508, %v617
          %620 = vrot.lane.b32.xlu0 %v611, 64
          %v621 = vpop.permute.xlu0 %620
          %623 = vst.msk [vmem:[#allocation4] sm:$0xff] %vm508, %v621
        $region80: #{tpu_custom_call.1} parent=75 // pred_fallthru
          _
        %s624 = smul.u32 %s33, 8
        %s625 = scalar_lea.vmem %s489, %s624
        %v626 = vld [vmem:[%s625] sm:$0xff]
        %s627 = scalar_lea.vmem %s493, %s624
        %v628 = vld [vmem:[%s627] sm:$0xff]
        %630 = vset.pattern.permute.xlu0 0
        %631 = vperm.xlu0 %630, %v628
        %v632 = vpop.permute.xlu0 %631
        %s634 = scalar_lea.vmem [#allocation2], %s624
        %v635 = vld [vmem:[%s634] sm:$0xff]
        %v636 = vld [vmem:[#allocation3] sm:$0xff]
        %v637 = vld [vmem:[#allocation4] sm:$0xff]
        %vm638 = vcmask 64512
        %v640 = vsel %vm638, %v635, 0
        %v643 = vsel %vm638, %v636, 0
        %645 = vmatprep.subr.mxu0 0.0
        %646 = vmatpush1.xpose.msra.mxu0 %v643
        %647 = vmatprep.subr.mxu0 0.0
        %648 = vmatpush1.xpose.msra.mxu0 0.0
        %649 = vmatprep.subr.mxu0 0.0
        %650 = vmatpush1.xpose.msra.mxu0 0.0
        %651 = vmatprep.subr.mxu0 0.0
        %652 = vmatpush1.xpose.msra.mxu0 0.0
        %653 = vmatprep.subr.mxu0 0.0
        %654 = vmatpush1.xpose.msra.mxu0 0.0
        %655 = vmatprep.subr.mxu0 0.0
        %656 = vmatpush1.xpose.msra.mxu0 0.0
        %657 = vmatprep.subr.mxu0 0.0
        %658 = vmatpush1.xpose.msra.mxu0 0.0
        %659 = vmatprep.subr.mxu0 0.0
        %660 = vmatpush1.xpose.msra.mxu0 0.0
        %661 = vmatprep.subr.mxu0 0.0
        %662 = vmatpush1.xpose.msra.mxu0 0.0
        %663 = vmatprep.subr.mxu0 0.0
        %664 = vmatpush1.xpose.msra.mxu0 0.0
        %665 = vmatprep.subr.mxu0 0.0
        %666 = vmatpush1.xpose.msra.mxu0 0.0
        %667 = vmatprep.subr.mxu0 0.0
        %668 = vmatpush1.xpose.msra.mxu0 0.0
        %669 = vmatprep.subr.mxu0 0.0
        %670 = vmatpush1.xpose.msra.mxu0 0.0
        %671 = vmatprep.subr.mxu0 0.0
        %672 = vmatpush1.xpose.msra.mxu0 0.0
        %673 = vmatprep.subr.mxu0 0.0
        %674 = vmatpush1.xpose.msra.mxu0 0.0
        %675 = vmatprep.subr.mxu0 0.0
        %676 = vmatpush1.xpose.msra.mxu0 0.0
        %677 = vmatprep.subr.mxu0 0.0
        %678 = vmatpush1.xpose.msra.mxu0 0.0
        %679 = vmatprep.subr.mxu0 0.0
        %680 = vmatpush1.xpose.msra.mxu0 0.0
        %681 = vmatprep.subr.mxu0 0.0
        %682 = vmatpush1.xpose.msra.mxu0 0.0
        %683 = vmatprep.subr.mxu0 0.0
        %684 = vmatpush1.xpose.msra.mxu0 0.0
        %685 = vmatprep.subr.mxu0 0.0
        %686 = vmatpush1.xpose.msra.mxu0 0.0
        %687 = vmatprep.subr.mxu0 0.0
        %688 = vmatpush1.xpose.msra.mxu0 0.0
        %689 = vmatprep.subr.mxu0 0.0
        %690 = vmatpush1.xpose.msra.mxu0 0.0
        %691 = vmatprep.subr.mxu0 0.0
        %692 = vmatpush1.xpose.msra.mxu0 0.0
        %693 = vmatprep.subr.mxu0 0.0
        %694 = vmatpush1.xpose.msra.mxu0 0.0
        %695 = vmatprep.subr.mxu0 0.0
        %696 = vmatpush1.xpose.msra.mxu0 0.0
        %697 = vmatprep.subr.mxu0 0.0
        %698 = vmatpush1.xpose.msra.mxu0 0.0
        %699 = vmatprep.subr.mxu0 0.0
        %700 = vmatpush1.xpose.msra.mxu0 0.0
        %701 = vmatprep.subr.mxu0 0.0
        %702 = vmatpush1.xpose.msra.mxu0 0.0
        %703 = vmatprep.subr.mxu0 0.0
        %704 = vmatpush1.xpose.msra.mxu0 0.0
        %705 = vmatprep.subr.mxu0 0.0
        %706 = vmatpush1.xpose.msra.mxu0 0.0
        %707 = vmatprep.subr.mxu0 0.0
        %708 = vmatpush1.xpose.msra.mxu0 0.0
        %709 = vmatprep.mubr.f32.mxu0 0.0
        %710 = vmatmul.mubr.f32.gmra.mrb[0].mxu0 %v640
        %v711 = vpop.f32.mrb[0].mxu0
        %v712 = vadd.f32 0.0, %v711
        %v713 = vpop.f32.mrb[0].mxu0
        %714 = vdwg.mxu0
        %v715 = vmul.f32 %v712, 0.35355338
        %v716 = vsel %vm638, %v715, -inf
        %717 = vmax.xlane.f32.xlu0 %v716
        %v718 = vpop.xlane.xlu0 %717
        %v719 = vsub.f32 %v715, %v718
        %v720 = vmul.f32 %v719, 1.442695
        %v721 = vpow.pop %v720
        %v722 = vsel %vm638, %v721, 0.0
        %723 = vadd.xlane.f32.xlu0 %v722
        %v724 = vpop.xlane.xlu0 %723
        %v725 = vrcp.pop %v724
        %v726 = vmul.f32 %v721, %v725
        %v728 = vsel %vm638, %v726, 0
        %730 = vmatprep.subr.mxu0 0.0
        %731 = vmatpush1.msra.mxu0 %v637
        %732 = vmatprep.subr.mxu0 0.0
        %733 = vmatpush1.msra.mxu0 0.0
        %734 = vmatprep.subr.mxu0 0.0
        %735 = vmatpush1.msra.mxu0 0.0
        %736 = vmatprep.subr.mxu0 0.0
        %737 = vmatpush1.msra.mxu0 0.0
        %738 = vmatprep.subr.mxu0 0.0
        %739 = vmatpush1.msra.mxu0 0.0
        %740 = vmatprep.subr.mxu0 0.0
        %741 = vmatpush1.msra.mxu0 0.0
        %742 = vmatprep.subr.mxu0 0.0
        %743 = vmatpush1.msra.mxu0 0.0
        %744 = vmatprep.subr.mxu0 0.0
        %745 = vmatpush1.msra.mxu0 0.0
        %746 = vmatprep.subr.mxu0 0.0
        %747 = vmatpush1.msra.mxu0 0.0
        %748 = vmatprep.subr.mxu0 0.0
        %749 = vmatpush1.msra.mxu0 0.0
        %750 = vmatprep.subr.mxu0 0.0
        %751 = vmatpush1.msra.mxu0 0.0
        %752 = vmatprep.subr.mxu0 0.0
        %753 = vmatpush1.msra.mxu0 0.0
        %754 = vmatprep.subr.mxu0 0.0
        %755 = vmatpush1.msra.mxu0 0.0
        %756 = vmatprep.subr.mxu0 0.0
        %757 = vmatpush1.msra.mxu0 0.0
        %758 = vmatprep.subr.mxu0 0.0
        %759 = vmatpush1.msra.mxu0 0.0
        %760 = vmatprep.subr.mxu0 0.0
        %761 = vmatpush1.msra.mxu0 0.0
        %762 = vmatprep.subr.mxu0 0.0
        %763 = vmatpush1.msra.mxu0 0.0
        %764 = vmatprep.subr.mxu0 0.0
        %765 = vmatpush1.msra.mxu0 0.0
        %766 = vmatprep.subr.mxu0 0.0
        %767 = vmatpush1.msra.mxu0 0.0
        %768 = vmatprep.subr.mxu0 0.0
        %769 = vmatpush1.msra.mxu0 0.0
        %770 = vmatprep.subr.mxu0 0.0
        %771 = vmatpush1.msra.mxu0 0.0
        %772 = vmatprep.subr.mxu0 0.0
        %773 = vmatpush1.msra.mxu0 0.0
        %774 = vmatprep.subr.mxu0 0.0
        %775 = vmatpush1.msra.mxu0 0.0
        %776 = vmatprep.subr.mxu0 0.0
        %777 = vmatpush1.msra.mxu0 0.0
        %778 = vmatprep.subr.mxu0 0.0
        %779 = vmatpush1.msra.mxu0 0.0
        %780 = vmatprep.subr.mxu0 0.0
        %781 = vmatpush1.msra.mxu0 0.0
        %782 = vmatprep.subr.mxu0 0.0
        %783 = vmatpush1.msra.mxu0 0.0
        %784 = vmatprep.subr.mxu0 0.0
        %785 = vmatpush1.msra.mxu0 0.0
        %786 = vmatprep.subr.mxu0 0.0
        %787 = vmatpush1.msra.mxu0 0.0
        %788 = vmatprep.subr.mxu0 0.0
        %789 = vmatpush1.msra.mxu0 0.0
        %790 = vmatprep.subr.mxu0 0.0
        %791 = vmatpush1.msra.mxu0 0.0
        %792 = vmatprep.subr.mxu0 0.0
        %793 = vmatpush1.msra.mxu0 0.0
        %794 = vmatprep.mubr.f32.mxu0 0.0
        %795 = vmatmul.mubr.f32.gmra.mrb[0].mxu0 %v728
        %v796 = vpop.f32.mrb[0].mxu0
        %v797 = vadd.f32 0.0, %v796
        %v798 = vpop.f32.mrb[0].mxu0
        %799 = vdwg.mxu0
        %v800 = vld [vmem:[%s5] sm:$0xff]
        %801 = vrot.lane.b32.xlu0 %v635, 120
        %v802 = vpop.permute.xlu0 %801
        %803 = vrot.lane.b32.xlu0 %v636, 120
        %v804 = vpop.permute.xlu0 %803
        %v805 = vsel %vm638, %v802, 0
        %v807 = vsel %vm638, %v804, 0
        %809 = vmatprep.subr.mxu0 0.0
        %810 = vmatpush1.xpose.msra.mxu0 %v807
        %811 = vmatprep.subr.mxu0 0.0
        %812 = vmatpush1.xpose.msra.mxu0 0.0
        %813 = vmatprep.subr.mxu0 0.0
        %814 = vmatpush1.xpose.msra.mxu0 0.0
        %815 = vmatprep.subr.mxu0 0.0
        %816 = vmatpush1.xpose.msra.mxu0 0.0
        %817 = vmatprep.subr.mxu0 0.0
        %818 = vmatpush1.xpose.msra.mxu0 0.0
        %819 = vmatprep.subr.mxu0 0.0
        %820 = vmatpush1.xpose.msra.mxu0 0.0
        %821 = vmatprep.subr.mxu0 0.0
        %822 = vmatpush1.xpose.msra.mxu0 0.0
        %823 = vmatprep.subr.mxu0 0.0
        %824 = vmatpush1.xpose.msra.mxu0 0.0
        %825 = vmatprep.subr.mxu0 0.0
        %826 = vmatpush1.xpose.msra.mxu0 0.0
        %827 = vmatprep.subr.mxu0 0.0
        %828 = vmatpush1.xpose.msra.mxu0 0.0
        %829 = vmatprep.subr.mxu0 0.0
        %830 = vmatpush1.xpose.msra.mxu0 0.0
        %831 = vmatprep.subr.mxu0 0.0
        %832 = vmatpush1.xpose.msra.mxu0 0.0
        %833 = vmatprep.subr.mxu0 0.0
        %834 = vmatpush1.xpose.msra.mxu0 0.0
        %835 = vmatprep.subr.mxu0 0.0
        %836 = vmatpush1.xpose.msra.mxu0 0.0
        %837 = vmatprep.subr.mxu0 0.0
        %838 = vmatpush1.xpose.msra.mxu0 0.0
        %839 = vmatprep.subr.mxu0 0.0
        %840 = vmatpush1.xpose.msra.mxu0 0.0
        %841 = vmatprep.subr.mxu0 0.0
        %842 = vmatpush1.xpose.msra.mxu0 0.0
        %843 = vmatprep.subr.mxu0 0.0
        %844 = vmatpush1.xpose.msra.mxu0 0.0
        %845 = vmatprep.subr.mxu0 0.0
        %846 = vmatpush1.xpose.msra.mxu0 0.0
        %847 = vmatprep.subr.mxu0 0.0
        %848 = vmatpush1.xpose.msra.mxu0 0.0
        %849 = vmatprep.subr.mxu0 0.0
        %850 = vmatpush1.xpose.msra.mxu0 0.0
        %851 = vmatprep.subr.mxu0 0.0
        %852 = vmatpush1.xpose.msra.mxu0 0.0
        %853 = vmatprep.subr.mxu0 0.0
        %854 = vmatpush1.xpose.msra.mxu0 0.0
        %855 = vmatprep.subr.mxu0 0.0
        %856 = vmatpush1.xpose.msra.mxu0 0.0
        %857 = vmatprep.subr.mxu0 0.0
        %858 = vmatpush1.xpose.msra.mxu0 0.0
        %859 = vmatprep.subr.mxu0 0.0
        %860 = vmatpush1.xpose.msra.mxu0 0.0
        %861 = vmatprep.subr.mxu0 0.0
        %862 = vmatpush1.xpose.msra.mxu0 0.0
        %863 = vmatprep.subr.mxu0 0.0
        %864 = vmatpush1.xpose.msra.mxu0 0.0
        %865 = vmatprep.subr.mxu0 0.0
        %866 = vmatpush1.xpose.msra.mxu0 0.0
        %867 = vmatprep.subr.mxu0 0.0
        %868 = vmatpush1.xpose.msra.mxu0 0.0
        %869 = vmatprep.subr.mxu0 0.0
        %870 = vmatpush1.xpose.msra.mxu0 0.0
        %871 = vmatprep.subr.mxu0 0.0
        %872 = vmatpush1.xpose.msra.mxu0 0.0
        %873 = vmatprep.mubr.f32.mxu0 0.0
        %874 = vmatmul.mubr.f32.gmra.mrb[0].mxu0 %v805
        %v875 = vpop.f32.mrb[0].mxu0
        %v876 = vadd.f32 0.0, %v875
        %v877 = vpop.f32.mrb[0].mxu0
        %878 = vdwg.mxu0
        %v879 = vmul.f32 %v876, 0.35355338
        %v880 = vsel %vm638, %v879, -inf
        %881 = vmax.xlane.f32.xlu0 %v880
        %v882 = vpop.xlane.xlu0 %881
        %v883 = vsub.f32 %v879, %v882
        %v884 = vmul.f32 %v883, 1.442695
        %v885 = vpow.pop %v884
        %v886 = vsel %vm638, %v885, 0.0
        %887 = vadd.xlane.f32.xlu0 %v886
        %v888 = vpop.xlane.xlu0 %887
        %v889 = vrcp.pop %v888
        %v890 = vmul.f32 %v885, %v889
        %892 = vrot.lane.b32.xlu0 %v637, 120
        %v893 = vpop.permute.xlu0 %892
        %v896 = vsel %vm638, %v890, 0
        %898 = vmatprep.subr.mxu0 0.0
        %899 = vmatpush1.msra.mxu0 %v893
        %900 = vmatprep.subr.mxu0 0.0
        %901 = vmatpush1.msra.mxu0 0.0
        %902 = vmatprep.subr.mxu0 0.0
        %903 = vmatpush1.msra.mxu0 0.0
        %904 = vmatprep.subr.mxu0 0.0
        %905 = vmatpush1.msra.mxu0 0.0
        %906 = vmatprep.subr.mxu0 0.0
        %907 = vmatpush1.msra.mxu0 0.0
        %908 = vmatprep.subr.mxu0 0.0
        %909 = vmatpush1.msra.mxu0 0.0
        %910 = vmatprep.subr.mxu0 0.0
        %911 = vmatpush1.msra.mxu0 0.0
        %912 = vmatprep.subr.mxu0 0.0
        %913 = vmatpush1.msra.mxu0 0.0
        %914 = vmatprep.subr.mxu0 0.0
        %915 = vmatpush1.msra.mxu0 0.0
        %916 = vmatprep.subr.mxu0 0.0
        %917 = vmatpush1.msra.mxu0 0.0
        %918 = vmatprep.subr.mxu0 0.0
        %919 = vmatpush1.msra.mxu0 0.0
        %920 = vmatprep.subr.mxu0 0.0
        %921 = vmatpush1.msra.mxu0 0.0
        %922 = vmatprep.subr.mxu0 0.0
        %923 = vmatpush1.msra.mxu0 0.0
        %924 = vmatprep.subr.mxu0 0.0
        %925 = vmatpush1.msra.mxu0 0.0
        %926 = vmatprep.subr.mxu0 0.0
        %927 = vmatpush1.msra.mxu0 0.0
        %928 = vmatprep.subr.mxu0 0.0
        %929 = vmatpush1.msra.mxu0 0.0
        %930 = vmatprep.subr.mxu0 0.0
        %931 = vmatpush1.msra.mxu0 0.0
        %932 = vmatprep.subr.mxu0 0.0
        %933 = vmatpush1.msra.mxu0 0.0
        %934 = vmatprep.subr.mxu0 0.0
        %935 = vmatpush1.msra.mxu0 0.0
        %936 = vmatprep.subr.mxu0 0.0
        %937 = vmatpush1.msra.mxu0 0.0
        %938 = vmatprep.subr.mxu0 0.0
        %939 = vmatpush1.msra.mxu0 0.0
        %940 = vmatprep.subr.mxu0 0.0
        %941 = vmatpush1.msra.mxu0 0.0
        %942 = vmatprep.subr.mxu0 0.0
        %943 = vmatpush1.msra.mxu0 0.0
        %944 = vmatprep.subr.mxu0 0.0
        %945 = vmatpush1.msra.mxu0 0.0
        %946 = vmatprep.subr.mxu0 0.0
        %947 = vmatpush1.msra.mxu0 0.0
        %948 = vmatprep.subr.mxu0 0.0
        %949 = vmatpush1.msra.mxu0 0.0
        %950 = vmatprep.subr.mxu0 0.0
        %951 = vmatpush1.msra.mxu0 0.0
        %952 = vmatprep.subr.mxu0 0.0
        %953 = vmatpush1.msra.mxu0 0.0
        %954 = vmatprep.subr.mxu0 0.0
        %955 = vmatpush1.msra.mxu0 0.0
        %956 = vmatprep.subr.mxu0 0.0
        %957 = vmatpush1.msra.mxu0 0.0
        %958 = vmatprep.subr.mxu0 0.0
        %959 = vmatpush1.msra.mxu0 0.0
        %960 = vmatprep.subr.mxu0 0.0
        %961 = vmatpush1.msra.mxu0 0.0
        %962 = vmatprep.mubr.f32.mxu0 0.0
        %963 = vmatmul.mubr.f32.gmra.mrb[0].mxu0 %v896
        %v964 = vpop.f32.mrb[0].mxu0
        %v965 = vadd.f32 0.0, %v964
        %v966 = vpop.f32.mrb[0].mxu0
        %967 = vdwg.mxu0
        %v968 = vld [vmem:[%s5 + $0x8] sm:$0xff]
        %v970 = vsel %vm638, %v965, 0
        %972 = vmatprep.subr.mxu0 0.0
        %973 = vmatpush1.msra.mxu0 %v968
        %974 = vmatprep.subr.mxu0 0.0
        %975 = vmatpush1.msra.mxu0 0.0
        %976 = vmatprep.subr.mxu0 0.0
        %977 = vmatpush1.msra.mxu0 0.0
        %978 = vmatprep.subr.mxu0 0.0
        %979 = vmatpush1.msra.mxu0 0.0
        %980 = vmatprep.subr.mxu0 0.0
        %981 = vmatpush1.msra.mxu0 0.0
        %982 = vmatprep.subr.mxu0 0.0
        %983 = vmatpush1.msra.mxu0 0.0
        %984 = vmatprep.subr.mxu0 0.0
        %985 = vmatpush1.msra.mxu0 0.0
        %986 = vmatprep.subr.mxu0 0.0
        %987 = vmatpush1.msra.mxu0 0.0
        %988 = vmatprep.subr.mxu0 0.0
        %989 = vmatpush1.msra.mxu0 0.0
        %990 = vmatprep.subr.mxu0 0.0
        %991 = vmatpush1.msra.mxu0 0.0
        %992 = vmatprep.subr.mxu0 0.0
        %993 = vmatpush1.msra.mxu0 0.0
        %994 = vmatprep.subr.mxu0 0.0
        %995 = vmatpush1.msra.mxu0 0.0
        %996 = vmatprep.subr.mxu0 0.0
        %997 = vmatpush1.msra.mxu0 0.0
        %998 = vmatprep.subr.mxu0 0.0
        %999 = vmatpush1.msra.mxu0 0.0
        %1000 = vmatprep.subr.mxu0 0.0
        %1001 = vmatpush1.msra.mxu0 0.0
        %1002 = vmatprep.subr.mxu0 0.0
        %1003 = vmatpush1.msra.mxu0 0.0
        %1004 = vmatprep.subr.mxu0 0.0
        %1005 = vmatpush1.msra.mxu0 0.0
        %1006 = vmatprep.subr.mxu0 0.0
        %1007 = vmatpush1.msra.mxu0 0.0
        %1008 = vmatprep.subr.mxu0 0.0
        %1009 = vmatpush1.msra.mxu0 0.0
        %1010 = vmatprep.subr.mxu0 0.0
        %1011 = vmatpush1.msra.mxu0 0.0
        %1012 = vmatprep.subr.mxu0 0.0
        %1013 = vmatpush1.msra.mxu0 0.0
        %1014 = vmatprep.subr.mxu0 0.0
        %1015 = vmatpush1.msra.mxu0 0.0
        %1016 = vmatprep.subr.mxu0 0.0
        %1017 = vmatpush1.msra.mxu0 0.0
        %1018 = vmatprep.subr.mxu0 0.0
        %1019 = vmatpush1.msra.mxu0 0.0
        %1020 = vmatprep.subr.mxu0 0.0
        %1021 = vmatpush1.msra.mxu0 0.0
        %1022 = vmatprep.subr.mxu0 0.0
        %1023 = vmatpush1.msra.mxu0 0.0
        %1024 = vmatprep.subr.mxu0 0.0
        %1025 = vmatpush1.msra.mxu0 0.0
        %1026 = vmatprep.subr.mxu0 0.0
        %1027 = vmatpush1.msra.mxu0 0.0
        %1028 = vmatprep.subr.mxu0 0.0
        %1029 = vmatpush1.msra.mxu0 0.0
        %1030 = vmatprep.subr.mxu0 0.0
        %1031 = vmatpush1.msra.mxu0 0.0
        %1032 = vmatprep.subr.mxu0 0.0
        %1033 = vmatpush1.msra.mxu0 0.0
        %1034 = vmatprep.subr.mxu0 0.0
        %1035 = vmatpush1.msra.mxu0 0.0
        %1036 = vmatprep.mubr.f32.mxu0 0.0
        %1037 = vmatmul.mubr.f32.gmra.mrb[0].mxu0 %v970
        %v1038 = vpop.f32.mrb[0].mxu0
        %v1039 = vadd.f32 0.0, %v1038
        %v1040 = vpop.f32.mrb[0].mxu0
        %1041 = vdwg.mxu0
        %v1043 = vsel %vm638, %v797, 0
        %1045 = vmatprep.subr.mxu0 0.0
        %1046 = vmatpush1.msra.mxu0 %v800
        %1047 = vmatprep.subr.mxu0 0.0
        %1048 = vmatpush1.msra.mxu0 0.0
        %1049 = vmatprep.subr.mxu0 0.0
        %1050 = vmatpush1.msra.mxu0 0.0
        %1051 = vmatprep.subr.mxu0 0.0
        %1052 = vmatpush1.msra.mxu0 0.0
        %1053 = vmatprep.subr.mxu0 0.0
        %1054 = vmatpush1.msra.mxu0 0.0
        %1055 = vmatprep.subr.mxu0 0.0
        %1056 = vmatpush1.msra.mxu0 0.0
        %1057 = vmatprep.subr.mxu0 0.0
        %1058 = vmatpush1.msra.mxu0 0.0
        %1059 = vmatprep.subr.mxu0 0.0
        %1060 = vmatpush1.msra.mxu0 0.0
        %1061 = vmatprep.subr.mxu0 0.0
        %1062 = vmatpush1.msra.mxu0 0.0
        %1063 = vmatprep.subr.mxu0 0.0
        %1064 = vmatpush1.msra.mxu0 0.0
        %1065 = vmatprep.subr.mxu0 0.0
        %1066 = vmatpush1.msra.mxu0 0.0
        %1067 = vmatprep.subr.mxu0 0.0
        %1068 = vmatpush1.msra.mxu0 0.0
        %1069 = vmatprep.subr.mxu0 0.0
        %1070 = vmatpush1.msra.mxu0 0.0
        %1071 = vmatprep.subr.mxu0 0.0
        %1072 = vmatpush1.msra.mxu0 0.0
        %1073 = vmatprep.subr.mxu0 0.0
        %1074 = vmatpush1.msra.mxu0 0.0
        %1075 = vmatprep.subr.mxu0 0.0
        %1076 = vmatpush1.msra.mxu0 0.0
        %1077 = vmatprep.subr.mxu0 0.0
        %1078 = vmatpush1.msra.mxu0 0.0
        %1079 = vmatprep.subr.mxu0 0.0
        %1080 = vmatpush1.msra.mxu0 0.0
        %1081 = vmatprep.subr.mxu0 0.0
        %1082 = vmatpush1.msra.mxu0 0.0
        %1083 = vmatprep.subr.mxu0 0.0
        %1084 = vmatpush1.msra.mxu0 0.0
        %1085 = vmatprep.subr.mxu0 0.0
        %1086 = vmatpush1.msra.mxu0 0.0
        %1087 = vmatprep.subr.mxu0 0.0
        %1088 = vmatpush1.msra.mxu0 0.0
        %1089 = vmatprep.subr.mxu0 0.0
        %1090 = vmatpush1.msra.mxu0 0.0
        %1091 = vmatprep.subr.mxu0 0.0
        %1092 = vmatpush1.msra.mxu0 0.0
        %1093 = vmatprep.subr.mxu0 0.0
        %1094 = vmatpush1.msra.mxu0 0.0
        %1095 = vmatprep.subr.mxu0 0.0
        %1096 = vmatpush1.msra.mxu0 0.0
        %1097 = vmatprep.subr.mxu0 0.0
        %1098 = vmatpush1.msra.mxu0 0.0
        %1099 = vmatprep.subr.mxu0 0.0
        %1100 = vmatpush1.msra.mxu0 0.0
        %1101 = vmatprep.subr.mxu0 0.0
        %1102 = vmatpush1.msra.mxu0 0.0
        %1103 = vmatprep.subr.mxu0 0.0
        %1104 = vmatpush1.msra.mxu0 0.0
        %1105 = vmatprep.subr.mxu0 0.0
        %1106 = vmatpush1.msra.mxu0 0.0
        %1107 = vmatprep.subr.mxu0 0.0
        %1108 = vmatpush1.msra.mxu0 0.0
        %1109 = vmatprep.mubr.f32.mxu0 0.0
        %1110 = vmatmul.mubr.f32.gmra.mrb[0].mxu0 %v1043
        %v1111 = vpop.f32.mrb[0].mxu0
        %v1112 = vadd.f32 %v1039, %v1111
        %v1113 = vpop.f32.mrb[0].mxu0
        %1114 = vdwg.mxu0
        %1115 = vrot.lane.b32.xlu0 %v635, 112
        %v1116 = vpop.permute.xlu0 %1115
        %1117 = vrot.lane.b32.xlu0 %v636, 112
        %v1118 = vpop.permute.xlu0 %1117
        %v1119 = vsel %vm638, %v1116, 0
        %v1121 = vsel %vm638, %v1118, 0
        %1123 = vmatprep.subr.mxu0 0.0
        %1124 = vmatpush1.xpose.msra.mxu0 %v1121
        %1125 = vmatprep.subr.mxu0 0.0
        %1126 = vmatpush1.xpose.msra.mxu0 0.0
        %1127 = vmatprep.subr.mxu0 0.0
        %1128 = vmatpush1.xpose.msra.mxu0 0.0
        %1129 = vmatprep.subr.mxu0 0.0
        %1130 = vmatpush1.xpose.msra.mxu0 0.0
        %1131 = vmatprep.subr.mxu0 0.0
        %1132 = vmatpush1.xpose.msra.mxu0 0.0
        %1133 = vmatprep.subr.mxu0 0.0
        %1134 = vmatpush1.xpose.msra.mxu0 0.0
        %1135 = vmatprep.subr.mxu0 0.0
        %1136 = vmatpush1.xpose.msra.mxu0 0.0
        %1137 = vmatprep.subr.mxu0 0.0
        %1138 = vmatpush1.xpose.msra.mxu0 0.0
        %1139 = vmatprep.subr.mxu0 0.0
        %1140 = vmatpush1.xpose.msra.mxu0 0.0
        %1141 = vmatprep.subr.mxu0 0.0
        %1142 = vmatpush1.xpose.msra.mxu0 0.0
        %1143 = vmatprep.subr.mxu0 0.0
        %1144 = vmatpush1.xpose.msra.mxu0 0.0
        %1145 = vmatprep.subr.mxu0 0.0
        %1146 = vmatpush1.xpose.msra.mxu0 0.0
        %1147 = vmatprep.subr.mxu0 0.0
        %1148 = vmatpush1.xpose.msra.mxu0 0.0
        %1149 = vmatprep.subr.mxu0 0.0
        %1150 = vmatpush1.xpose.msra.mxu0 0.0
        %1151 = vmatprep.subr.mxu0 0.0
        %1152 = vmatpush1.xpose.msra.mxu0 0.0
        %1153 = vmatprep.subr.mxu0 0.0
        %1154 = vmatpush1.xpose.msra.mxu0 0.0
        %1155 = vmatprep.subr.mxu0 0.0
        %1156 = vmatpush1.xpose.msra.mxu0 0.0
        %1157 = vmatprep.subr.mxu0 0.0
        %1158 = vmatpush1.xpose.msra.mxu0 0.0
        %1159 = vmatprep.subr.mxu0 0.0
        %1160 = vmatpush1.xpose.msra.mxu0 0.0
        %1161 = vmatprep.subr.mxu0 0.0
        %1162 = vmatpush1.xpose.msra.mxu0 0.0
        %1163 = vmatprep.subr.mxu0 0.0
        %1164 = vmatpush1.xpose.msra.mxu0 0.0
        %1165 = vmatprep.subr.mxu0 0.0
        %1166 = vmatpush1.xpose.msra.mxu0 0.0
        %1167 = vmatprep.subr.mxu0 0.0
        %1168 = vmatpush1.xpose.msra.mxu0 0.0
        %1169 = vmatprep.subr.mxu0 0.0
        %1170 = vmatpush1.xpose.msra.mxu0 0.0
        %1171 = vmatprep.subr.mxu0 0.0
        %1172 = vmatpush1.xpose.msra.mxu0 0.0
        %1173 = vmatprep.subr.mxu0 0.0
        %1174 = vmatpush1.xpose.msra.mxu0 0.0
        %1175 = vmatprep.subr.mxu0 0.0
        %1176 = vmatpush1.xpose.msra.mxu0 0.0
        %1177 = vmatprep.subr.mxu0 0.0
        %1178 = vmatpush1.xpose.msra.mxu0 0.0
        %1179 = vmatprep.subr.mxu0 0.0
        %1180 = vmatpush1.xpose.msra.mxu0 0.0
        %1181 = vmatprep.subr.mxu0 0.0
        %1182 = vmatpush1.xpose.msra.mxu0 0.0
        %1183 = vmatprep.subr.mxu0 0.0
        %1184 = vmatpush1.xpose.msra.mxu0 0.0
        %1185 = vmatprep.subr.mxu0 0.0
        %1186 = vmatpush1.xpose.msra.mxu0 0.0
        %1187 = vmatprep.mubr.f32.mxu0 0.0
        %1188 = vmatmul.mubr.f32.gmra.mrb[0].mxu0 %v1119
        %v1189 = vpop.f32.mrb[0].mxu0
        %v1190 = vadd.f32 0.0, %v1189
        %v1191 = vpop.f32.mrb[0].mxu0
        %1192 = vdwg.mxu0
        %v1193 = vmul.f32 %v1190, 0.35355338
        %v1194 = vsel %vm638, %v1193, -inf
        %1195 = vmax.xlane.f32.xlu0 %v1194
        %v1196 = vpop.xlane.xlu0 %1195
        %v1197 = vsub.f32 %v1193, %v1196
        %v1198 = vmul.f32 %v1197, 1.442695
        %v1199 = vpow.pop %v1198
        %v1200 = vsel %vm638, %v1199, 0.0
        %1201 = vadd.xlane.f32.xlu0 %v1200
        %v1202 = vpop.xlane.xlu0 %1201
        %v1203 = vrcp.pop %v1202
        %v1204 = vmul.f32 %v1199, %v1203
        %1205 = vrot.lane.b32.xlu0 %v637, 112
        %v1206 = vpop.permute.xlu0 %1205
        %v1209 = vsel %vm638, %v1204, 0
        %1211 = vmatprep.subr.mxu0 0.0
        %1212 = vmatpush1.msra.mxu0 %v1206
        %1213 = vmatprep.subr.mxu0 0.0
        %1214 = vmatpush1.msra.mxu0 0.0
        %1215 = vmatprep.subr.mxu0 0.0
        %1216 = vmatpush1.msra.mxu0 0.0
        %1217 = vmatprep.subr.mxu0 0.0
        %1218 = vmatpush1.msra.mxu0 0.0
        %1219 = vmatprep.subr.mxu0 0.0
        %1220 = vmatpush1.msra.mxu0 0.0
        %1221 = vmatprep.subr.mxu0 0.0
        %1222 = vmatpush1.msra.mxu0 0.0
        %1223 = vmatprep.subr.mxu0 0.0
        %1224 = vmatpush1.msra.mxu0 0.0
        %1225 = vmatprep.subr.mxu0 0.0
        %1226 = vmatpush1.msra.mxu0 0.0
        %1227 = vmatprep.subr.mxu0 0.0
        %1228 = vmatpush1.msra.mxu0 0.0
        %1229 = vmatprep.subr.mxu0 0.0
        %1230 = vmatpush1.msra.mxu0 0.0
        %1231 = vmatprep.subr.mxu0 0.0
        %1232 = vmatpush1.msra.mxu0 0.0
        %1233 = vmatprep.subr.mxu0 0.0
        %1234 = vmatpush1.msra.mxu0 0.0
        %1235 = vmatprep.subr.mxu0 0.0
        %1236 = vmatpush1.msra.mxu0 0.0
        %1237 = vmatprep.subr.mxu0 0.0
        %1238 = vmatpush1.msra.mxu0 0.0
        %1239 = vmatprep.subr.mxu0 0.0
        %1240 = vmatpush1.msra.mxu0 0.0
        %1241 = vmatprep.subr.mxu0 0.0
        %1242 = vmatpush1.msra.mxu0 0.0
        %1243 = vmatprep.subr.mxu0 0.0
        %1244 = vmatpush1.msra.mxu0 0.0
        %1245 = vmatprep.subr.mxu0 0.0
        %1246 = vmatpush1.msra.mxu0 0.0
        %1247 = vmatprep.subr.mxu0 0.0
        %1248 = vmatpush1.msra.mxu0 0.0
        %1249 = vmatprep.subr.mxu0 0.0
        %1250 = vmatpush1.msra.mxu0 0.0
        %1251 = vmatprep.subr.mxu0 0.0
        %1252 = vmatpush1.msra.mxu0 0.0
        %1253 = vmatprep.subr.mxu0 0.0
        %1254 = vmatpush1.msra.mxu0 0.0
        %1255 = vmatprep.subr.mxu0 0.0
        %1256 = vmatpush1.msra.mxu0 0.0
        %1257 = vmatprep.subr.mxu0 0.0
        %1258 = vmatpush1.msra.mxu0 0.0
        %1259 = vmatprep.subr.mxu0 0.0
        %1260 = vmatpush1.msra.mxu0 0.0
        %1261 = vmatprep.subr.mxu0 0.0
        %1262 = vmatpush1.msra.mxu0 0.0
        %1263 = vmatprep.subr.mxu0 0.0
        %1264 = vmatpush1.msra.mxu0 0.0
        %1265 = vmatprep.subr.mxu0 0.0
        %1266 = vmatpush1.msra.mxu0 0.0
        %1267 = vmatprep.subr.mxu0 0.0
        %1268 = vmatpush1.msra.mxu0 0.0
        %1269 = vmatprep.subr.mxu0 0.0
        %1270 = vmatpush1.msra.mxu0 0.0
        %1271 = vmatprep.subr.mxu0 0.0
        %1272 = vmatpush1.msra.mxu0 0.0
        %1273 = vmatprep.subr.mxu0 0.0
        %1274 = vmatpush1.msra.mxu0 0.0
        %1275 = vmatprep.mubr.f32.mxu0 0.0
        %1276 = vmatmul.mubr.f32.gmra.mrb[0].mxu0 %v1209
        %v1277 = vpop.f32.mrb[0].mxu0
        %v1278 = vadd.f32 0.0, %v1277
        %v1279 = vpop.f32.mrb[0].mxu0
        %1280 = vdwg.mxu0
        %v1281 = vld [vmem:[%s5 + $0x10] sm:$0xff]
        %v1283 = vsel %vm638, %v1278, 0
        %1285 = vmatprep.subr.mxu0 0.0
        %1286 = vmatpush1.msra.mxu0 %v1281
        %1287 = vmatprep.subr.mxu0 0.0
        %1288 = vmatpush1.msra.mxu0 0.0
        %1289 = vmatprep.subr.mxu0 0.0
        %1290 = vmatpush1.msra.mxu0 0.0
        %1291 = vmatprep.subr.mxu0 0.0
        %1292 = vmatpush1.msra.mxu0 0.0
        %1293 = vmatprep.subr.mxu0 0.0
        %1294 = vmatpush1.msra.mxu0 0.0
        %1295 = vmatprep.subr.mxu0 0.0
        %1296 = vmatpush1.msra.mxu0 0.0
        %1297 = vmatprep.subr.mxu0 0.0
        %1298 = vmatpush1.msra.mxu0 0.0
        %1299 = vmatprep.subr.mxu0 0.0
        %1300 = vmatpush1.msra.mxu0 0.0
        %1301 = vmatprep.subr.mxu0 0.0
        %1302 = vmatpush1.msra.mxu0 0.0
        %1303 = vmatprep.subr.mxu0 0.0
        %1304 = vmatpush1.msra.mxu0 0.0
        %1305 = vmatprep.subr.mxu0 0.0
        %1306 = vmatpush1.msra.mxu0 0.0
        %1307 = vmatprep.subr.mxu0 0.0
        %1308 = vmatpush1.msra.mxu0 0.0
        %1309 = vmatprep.subr.mxu0 0.0
        %1310 = vmatpush1.msra.mxu0 0.0
        %1311 = vmatprep.subr.mxu0 0.0
        %1312 = vmatpush1.msra.mxu0 0.0
        %1313 = vmatprep.subr.mxu0 0.0
        %1314 = vmatpush1.msra.mxu0 0.0
        %1315 = vmatprep.subr.mxu0 0.0
        %1316 = vmatpush1.msra.mxu0 0.0
        %1317 = vmatprep.subr.mxu0 0.0
        %1318 = vmatpush1.msra.mxu0 0.0
        %1319 = vmatprep.subr.mxu0 0.0
        %1320 = vmatpush1.msra.mxu0 0.0
        %1321 = vmatprep.subr.mxu0 0.0
        %1322 = vmatpush1.msra.mxu0 0.0
        %1323 = vmatprep.subr.mxu0 0.0
        %1324 = vmatpush1.msra.mxu0 0.0
        %1325 = vmatprep.subr.mxu0 0.0
        %1326 = vmatpush1.msra.mxu0 0.0
        %1327 = vmatprep.subr.mxu0 0.0
        %1328 = vmatpush1.msra.mxu0 0.0
        %1329 = vmatprep.subr.mxu0 0.0
        %1330 = vmatpush1.msra.mxu0 0.0
        %1331 = vmatprep.subr.mxu0 0.0
        %1332 = vmatpush1.msra.mxu0 0.0
        %1333 = vmatprep.subr.mxu0 0.0
        %1334 = vmatpush1.msra.mxu0 0.0
        %1335 = vmatprep.subr.mxu0 0.0
        %1336 = vmatpush1.msra.mxu0 0.0
        %1337 = vmatprep.subr.mxu0 0.0
        %1338 = vmatpush1.msra.mxu0 0.0
        %1339 = vmatprep.subr.mxu0 0.0
        %1340 = vmatpush1.msra.mxu0 0.0
        %1341 = vmatprep.subr.mxu0 0.0
        %1342 = vmatpush1.msra.mxu0 0.0
        %1343 = vmatprep.subr.mxu0 0.0
        %1344 = vmatpush1.msra.mxu0 0.0
        %1345 = vmatprep.subr.mxu0 0.0
        %1346 = vmatpush1.msra.mxu0 0.0
        %1347 = vmatprep.subr.mxu0 0.0
        %1348 = vmatpush1.msra.mxu0 0.0
        %1349 = vmatprep.mubr.f32.mxu0 0.0
        %1350 = vmatmul.mubr.f32.gmra.mrb[0].mxu0 %v1283
        %v1351 = vpop.f32.mrb[0].mxu0
        %v1352 = vadd.f32 0.0, %v1351
        %v1353 = vpop.f32.mrb[0].mxu0
        %1354 = vdwg.mxu0
        %v1355 = vadd.f32 %v1112, %v1352
        %1356 = vrot.lane.b32.xlu0 %v635, 104
        %v1357 = vpop.permute.xlu0 %1356
        %1358 = vrot.lane.b32.xlu0 %v636, 104
        %v1359 = vpop.permute.xlu0 %1358
        %v1360 = vsel %vm638, %v1357, 0
        %v1362 = vsel %vm638, %v1359, 0
        %1364 = vmatprep.subr.mxu0 0.0
        %1365 = vmatpush1.xpose.msra.mxu0 %v1362
        %1366 = vmatprep.subr.mxu0 0.0
        %1367 = vmatpush1.xpose.msra.mxu0 0.0
        %1368 = vmatprep.subr.mxu0 0.0
        %1369 = vmatpush1.xpose.msra.mxu0 0.0
        %1370 = vmatprep.subr.mxu0 0.0
        %1371 = vmatpush1.xpose.msra.mxu0 0.0
        %1372 = vmatprep.subr.mxu0 0.0
        %1373 = vmatpush1.xpose.msra.mxu0 0.0
        %1374 = vmatprep.subr.mxu0 0.0
        %1375 = vmatpush1.xpose.msra.mxu0 0.0
        %1376 = vmatprep.subr.mxu0 0.0
        %1377 = vmatpush1.xpose.msra.mxu0 0.0
        %1378 = vmatprep.subr.mxu0 0.0
        %1379 = vmatpush1.xpose.msra.mxu0 0.0
        %1380 = vmatprep.subr.mxu0 0.0
        %1381 = vmatpush1.xpose.msra.mxu0 0.0
        %1382 = vmatprep.subr.mxu0 0.0
        %1383 = vmatpush1.xpose.msra.mxu0 0.0
        %1384 = vmatprep.subr.mxu0 0.0
        %1385 = vmatpush1.xpose.msra.mxu0 0.0
        %1386 = vmatprep.subr.mxu0 0.0
        %1387 = vmatpush1.xpose.msra.mxu0 0.0
        %1388 = vmatprep.subr.mxu0 0.0
        %1389 = vmatpush1.xpose.msra.mxu0 0.0
        %1390 = vmatprep.subr.mxu0 0.0
        %1391 = vmatpush1.xpose.msra.mxu0 0.0
        %1392 = vmatprep.subr.mxu0 0.0
        %1393 = vmatpush1.xpose.msra.mxu0 0.0
        %1394 = vmatprep.subr.mxu0 0.0
        %1395 = vmatpush1.xpose.msra.mxu0 0.0
        %1396 = vmatprep.subr.mxu0 0.0
        %1397 = vmatpush1.xpose.msra.mxu0 0.0
        %1398 = vmatprep.subr.mxu0 0.0
        %1399 = vmatpush1.xpose.msra.mxu0 0.0
        %1400 = vmatprep.subr.mxu0 0.0
        %1401 = vmatpush1.xpose.msra.mxu0 0.0
        %1402 = vmatprep.subr.mxu0 0.0
        %1403 = vmatpush1.xpose.msra.mxu0 0.0
        %1404 = vmatprep.subr.mxu0 0.0
        %1405 = vmatpush1.xpose.msra.mxu0 0.0
        %1406 = vmatprep.subr.mxu0 0.0
        %1407 = vmatpush1.xpose.msra.mxu0 0.0
        %1408 = vmatprep.subr.mxu0 0.0
        %1409 = vmatpush1.xpose.msra.mxu0 0.0
        %1410 = vmatprep.subr.mxu0 0.0
        %1411 = vmatpush1.xpose.msra.mxu0 0.0
        %1412 = vmatprep.subr.mxu0 0.0
        %1413 = vmatpush1.xpose.msra.mxu0 0.0
        %1414 = vmatprep.subr.mxu0 0.0
        %1415 = vmatpush1.xpose.msra.mxu0 0.0
        %1416 = vmatprep.subr.mxu0 0.0
        %1417 = vmatpush1.xpose.msra.mxu0 0.0
        %1418 = vmatprep.subr.mxu0 0.0
        %1419 = vmatpush1.xpose.msra.mxu0 0.0
        %1420 = vmatprep.subr.mxu0 0.0
        %1421 = vmatpush1.xpose.msra.mxu0 0.0
        %1422 = vmatprep.subr.mxu0 0.0
        %1423 = vmatpush1.xpose.msra.mxu0 0.0
        %1424 = vmatprep.subr.mxu0 0.0
        %1425 = vmatpush1.xpose.msra.mxu0 0.0
        %1426 = vmatprep.subr.mxu0 0.0
        %1427 = vmatpush1.xpose.msra.mxu0 0.0
        %1428 = vmatprep.mubr.f32.mxu0 0.0
        %1429 = vmatmul.mubr.f32.gmra.mrb[0].mxu0 %v1360
        %v1430 = vpop.f32.mrb[0].mxu0
        %v1431 = vadd.f32 0.0, %v1430
        %v1432 = vpop.f32.mrb[0].mxu0
        %1433 = vdwg.mxu0
        %v1434 = vmul.f32 %v1431, 0.35355338
        %v1435 = vsel %vm638, %v1434, -inf
        %1436 = vmax.xlane.f32.xlu0 %v1435
        %v1437 = vpop.xlane.xlu0 %1436
        %v1438 = vsub.f32 %v1434, %v1437
        %v1439 = vmul.f32 %v1438, 1.442695
        %v1440 = vpow.pop %v1439
        %v1441 = vsel %vm638, %v1440, 0.0
        %1442 = vadd.xlane.f32.xlu0 %v1441
        %v1443 = vpop.xlane.xlu0 %1442
        %v1444 = vrcp.pop %v1443
        %v1445 = vmul.f32 %v1440, %v1444
        %1446 = vrot.lane.b32.xlu0 %v637, 104
        %v1447 = vpop.permute.xlu0 %1446
        %v1450 = vsel %vm638, %v1445, 0
        %1452 = vmatprep.subr.mxu0 0.0
        %1453 = vmatpush1.msra.mxu0 %v1447
        %1454 = vmatprep.subr.mxu0 0.0
        %1455 = vmatpush1.msra.mxu0 0.0
        %1456 = vmatprep.subr.mxu0 0.0
        %1457 = vmatpush1.msra.mxu0 0.0
        %1458 = vmatprep.subr.mxu0 0.0
        %1459 = vmatpush1.msra.mxu0 0.0
        %1460 = vmatprep.subr.mxu0 0.0
        %1461 = vmatpush1.msra.mxu0 0.0
        %1462 = vmatprep.subr.mxu0 0.0
        %1463 = vmatpush1.msra.mxu0 0.0
        %1464 = vmatprep.subr.mxu0 0.0
        %1465 = vmatpush1.msra.mxu0 0.0
        %1466 = vmatprep.subr.mxu0 0.0
        %1467 = vmatpush1.msra.mxu0 0.0
        %1468 = vmatprep.subr.mxu0 0.0
        %1469 = vmatpush1.msra.mxu0 0.0
        %1470 = vmatprep.subr.mxu0 0.0
        %1471 = vmatpush1.msra.mxu0 0.0
        %1472 = vmatprep.subr.mxu0 0.0
        %1473 = vmatpush1.msra.mxu0 0.0
        %1474 = vmatprep.subr.mxu0 0.0
        %1475 = vmatpush1.msra.mxu0 0.0
        %1476 = vmatprep.subr.mxu0 0.0
        %1477 = vmatpush1.msra.mxu0 0.0
        %1478 = vmatprep.subr.mxu0 0.0
        %1479 = vmatpush1.msra.mxu0 0.0
        %1480 = vmatprep.subr.mxu0 0.0
        %1481 = vmatpush1.msra.mxu0 0.0
        %1482 = vmatprep.subr.mxu0 0.0
        %1483 = vmatpush1.msra.mxu0 0.0
        %1484 = vmatprep.subr.mxu0 0.0
        %1485 = vmatpush1.msra.mxu0 0.0
        %1486 = vmatprep.subr.mxu0 0.0
        %1487 = vmatpush1.msra.mxu0 0.0
        %1488 = vmatprep.subr.mxu0 0.0
        %1489 = vmatpush1.msra.mxu0 0.0
        %1490 = vmatprep.subr.mxu0 0.0
        %1491 = vmatpush1.msra.mxu0 0.0
        %1492 = vmatprep.subr.mxu0 0.0
        %1493 = vmatpush1.msra.mxu0 0.0
        %1494 = vmatprep.subr.mxu0 0.0
        %1495 = vmatpush1.msra.mxu0 0.0
        %1496 = vmatprep.subr.mxu0 0.0
        %1497 = vmatpush1.msra.mxu0 0.0
        %1498 = vmatprep.subr.mxu0 0.0
        %1499 = vmatpush1.msra.mxu0 0.0
        %1500 = vmatprep.subr.mxu0 0.0
        %1501 = vmatpush1.msra.mxu0 0.0
        %1502 = vmatprep.subr.mxu0 0.0
        %1503 = vmatpush1.msra.mxu0 0.0
        %1504 = vmatprep.subr.mxu0 0.0
        %1505 = vmatpush1.msra.mxu0 0.0
        %1506 = vmatprep.subr.mxu0 0.0
        %1507 = vmatpush1.msra.mxu0 0.0
        %1508 = vmatprep.subr.mxu0 0.0
        %1509 = vmatpush1.msra.mxu0 0.0
        %1510 = vmatprep.subr.mxu0 0.0
        %1511 = vmatpush1.msra.mxu0 0.0
        %1512 = vmatprep.subr.mxu0 0.0
        %1513 = vmatpush1.msra.mxu0 0.0
        %1514 = vmatprep.subr.mxu0 0.0
        %1515 = vmatpush1.msra.mxu0 0.0
        %1516 = vmatprep.mubr.f32.mxu0 0.0
        %1517 = vmatmul.mubr.f32.gmra.mrb[0].mxu0 %v1450
        %v1518 = vpop.f32.mrb[0].mxu0
        %v1519 = vadd.f32 0.0, %v1518
        %v1520 = vpop.f32.mrb[0].mxu0
        %1521 = vdwg.mxu0
        %v1522 = vld [vmem:[%s5 + $0x18] sm:$0xff]
        %v1524 = vsel %vm638, %v1519, 0
        %1526 = vmatprep.subr.mxu0 0.0
        %1527 = vmatpush1.msra.mxu0 %v1522
        %1528 = vmatprep.subr.mxu0 0.0
        %1529 = vmatpush1.msra.mxu0 0.0
        %1530 = vmatprep.subr.mxu0 0.0
        %1531 = vmatpush1.msra.mxu0 0.0
        %1532 = vmatprep.subr.mxu0 0.0
        %1533 = vmatpush1.msra.mxu0 0.0
        %1534 = vmatprep.subr.mxu0 0.0
        %1535 = vmatpush1.msra.mxu0 0.0
        %1536 = vmatprep.subr.mxu0 0.0
        %1537 = vmatpush1.msra.mxu0 0.0
        %1538 = vmatprep.subr.mxu0 0.0
        %1539 = vmatpush1.msra.mxu0 0.0
        %1540 = vmatprep.subr.mxu0 0.0
        %1541 = vmatpush1.msra.mxu0 0.0
        %1542 = vmatprep.subr.mxu0 0.0
        %1543 = vmatpush1.msra.mxu0 0.0
        %1544 = vmatprep.subr.mxu0 0.0
        %1545 = vmatpush1.msra.mxu0 0.0
        %1546 = vmatprep.subr.mxu0 0.0
        %1547 = vmatpush1.msra.mxu0 0.0
        %1548 = vmatprep.subr.mxu0 0.0
        %1549 = vmatpush1.msra.mxu0 0.0
        %1550 = vmatprep.subr.mxu0 0.0
        %1551 = vmatpush1.msra.mxu0 0.0
        %1552 = vmatprep.subr.mxu0 0.0
        %1553 = vmatpush1.msra.mxu0 0.0
        %1554 = vmatprep.subr.mxu0 0.0
        %1555 = vmatpush1.msra.mxu0 0.0
        %1556 = vmatprep.subr.mxu0 0.0
        %1557 = vmatpush1.msra.mxu0 0.0
        %1558 = vmatprep.subr.mxu0 0.0
        %1559 = vmatpush1.msra.mxu0 0.0
        %1560 = vmatprep.subr.mxu0 0.0
        %1561 = vmatpush1.msra.mxu0 0.0
        %1562 = vmatprep.subr.mxu0 0.0
        %1563 = vmatpush1.msra.mxu0 0.0
        %1564 = vmatprep.subr.mxu0 0.0
        %1565 = vmatpush1.msra.mxu0 0.0
        %1566 = vmatprep.subr.mxu0 0.0
        %1567 = vmatpush1.msra.mxu0 0.0
        %1568 = vmatprep.subr.mxu0 0.0
        %1569 = vmatpush1.msra.mxu0 0.0
        %1570 = vmatprep.subr.mxu0 0.0
        %1571 = vmatpush1.msra.mxu0 0.0
        %1572 = vmatprep.subr.mxu0 0.0
        %1573 = vmatpush1.msra.mxu0 0.0
        %1574 = vmatprep.subr.mxu0 0.0
        %1575 = vmatpush1.msra.mxu0 0.0
        %1576 = vmatprep.subr.mxu0 0.0
        %1577 = vmatpush1.msra.mxu0 0.0
        %1578 = vmatprep.subr.mxu0 0.0
        %1579 = vmatpush1.msra.mxu0 0.0
        %1580 = vmatprep.subr.mxu0 0.0
        %1581 = vmatpush1.msra.mxu0 0.0
        %1582 = vmatprep.subr.mxu0 0.0
        %1583 = vmatpush1.msra.mxu0 0.0
        %1584 = vmatprep.subr.mxu0 0.0
        %1585 = vmatpush1.msra.mxu0 0.0
        %1586 = vmatprep.subr.mxu0 0.0
        %1587 = vmatpush1.msra.mxu0 0.0
        %1588 = vmatprep.subr.mxu0 0.0
        %1589 = vmatpush1.msra.mxu0 0.0
        %1590 = vmatprep.mubr.f32.mxu0 0.0
        %1591 = vmatmul.mubr.f32.gmra.mrb[0].mxu0 %v1524
        %v1592 = vpop.f32.mrb[0].mxu0
        %v1593 = vadd.f32 0.0, %v1592
        %v1594 = vpop.f32.mrb[0].mxu0
        %1595 = vdwg.mxu0
        %v1596 = vadd.f32 %v1355, %v1593
        %v1597 = vmul.f32 %v1596, %v632
        %v1598 = vadd.f32 %v626, %v1597
        %v1599 = vld [vmem:[%s6] sm:$0x1]
        %v1600 = vld [vmem:[%s7] sm:$0x1]
        %vm1601 = vcmask 261120
        %v1602 = vsel %vm1601, %v1598, 0.0
        %1603 = vadd.xlane.f32.xlu0 %v1602
        %v1604 = vpop.xlane.xlu0 %1603
        %v1605 = vrcp.pop 32.0
        %v1606 = vmul.f32 %v1604, %v1605
        %v1607 = vsub.f32 %v1598, %v1606
        %v1608 = vmul.f32 %v1607, %v1607
        %v1609 = vsel %vm1601, %v1608, 0.0
        %1610 = vadd.xlane.f32.xlu0 %v1609
        %v1611 = vpop.xlane.xlu0 %1610
        %v1612 = vmul.f32 %v1611, %v1605
        %v1613 = vadd.f32 %v1612, 1e-05
        %v1614 = vrsqrt.pop %v1613
        %v1615 = vmul.f32 %v1607, %v1614
        %v1617 = vlaneseq
        %v1618 = vshrl.u32 %v1617, 7
        %v1619 = vsub.s32 0, %v1618
        %v1620 = vrot.slane %v1599, %v1619
        %v1622 = vmul.f32 %v1615, %v1620
        %v1624 = vlaneseq
        %v1625 = vshrl.u32 %v1624, 7
        %v1626 = vsub.s32 0, %v1625
        %v1627 = vrot.slane %v1600, %v1626
        %v1629 = vadd.f32 %v1622, %v1627
        %v1630 = vld [vmem:[%s8] sm:$0xff]
        %v1631 = vld [vmem:[%s8 + $0x8] sm:$0xff]
        %v1632 = vld [vmem:[%s8 + $0x10] sm:$0xff]
        %v1633 = vld [vmem:[%s8 + $0x18] sm:$0xff]
        %v1634 = vld [vmem:[%s9] sm:$0x1]
        %v1636 = vlaneseq
        %v1637 = vshrl.u32 %v1636, 7
        %v1638 = vsub.s32 0, %v1637
        %v1639 = vrot.slane %v1634, %v1638
        %v1642 = vsel %vm1601, %v1629, 0
        %1644 = vmatprep.subr.mxu0 0.0
        %1645 = vmatpush1.msra.mxu0 %v1630
        %1646 = vmatprep.subr.mxu0 0.0
        %1647 = vmatpush1.msra.mxu0 %v1631
        %1648 = vmatprep.subr.mxu0 0.0
        %1649 = vmatpush1.msra.mxu0 %v1632
        %1650 = vmatprep.subr.mxu0 0.0
        %1651 = vmatpush1.msra.mxu0 %v1633
        %1652 = vmatprep.subr.mxu0 0.0
        %1653 = vmatpush1.msra.mxu0 0.0
        %1654 = vmatprep.subr.mxu0 0.0
        %1655 = vmatpush1.msra.mxu0 0.0
        %1656 = vmatprep.subr.mxu0 0.0
        %1657 = vmatpush1.msra.mxu0 0.0
        %1658 = vmatprep.subr.mxu0 0.0
        %1659 = vmatpush1.msra.mxu0 0.0
        %1660 = vmatprep.subr.mxu0 0.0
        %1661 = vmatpush1.msra.mxu0 0.0
        %1662 = vmatprep.subr.mxu0 0.0
        %1663 = vmatpush1.msra.mxu0 0.0
        %1664 = vmatprep.subr.mxu0 0.0
        %1665 = vmatpush1.msra.mxu0 0.0
        %1666 = vmatprep.subr.mxu0 0.0
        %1667 = vmatpush1.msra.mxu0 0.0
        %1668 = vmatprep.subr.mxu0 0.0
        %1669 = vmatpush1.msra.mxu0 0.0
        %1670 = vmatprep.subr.mxu0 0.0
        %1671 = vmatpush1.msra.mxu0 0.0
        %1672 = vmatprep.subr.mxu0 0.0
        %1673 = vmatpush1.msra.mxu0 0.0
        %1674 = vmatprep.subr.mxu0 0.0
        %1675 = vmatpush1.msra.mxu0 0.0
        %1676 = vmatprep.subr.mxu0 0.0
        %1677 = vmatpush1.msra.mxu0 0.0
        %1678 = vmatprep.subr.mxu0 0.0
        %1679 = vmatpush1.msra.mxu0 0.0
        %1680 = vmatprep.subr.mxu0 0.0
        %1681 = vmatpush1.msra.mxu0 0.0
        %1682 = vmatprep.subr.mxu0 0.0
        %1683 = vmatpush1.msra.mxu0 0.0
        %1684 = vmatprep.subr.mxu0 0.0
        %1685 = vmatpush1.msra.mxu0 0.0
        %1686 = vmatprep.subr.mxu0 0.0
        %1687 = vmatpush1.msra.mxu0 0.0
        %1688 = vmatprep.subr.mxu0 0.0
        %1689 = vmatpush1.msra.mxu0 0.0
        %1690 = vmatprep.subr.mxu0 0.0
        %1691 = vmatpush1.msra.mxu0 0.0
        %1692 = vmatprep.subr.mxu0 0.0
        %1693 = vmatpush1.msra.mxu0 0.0
        %1694 = vmatprep.subr.mxu0 0.0
        %1695 = vmatpush1.msra.mxu0 0.0
        %1696 = vmatprep.subr.mxu0 0.0
        %1697 = vmatpush1.msra.mxu0 0.0
        %1698 = vmatprep.subr.mxu0 0.0
        %1699 = vmatpush1.msra.mxu0 0.0
        %1700 = vmatprep.subr.mxu0 0.0
        %1701 = vmatpush1.msra.mxu0 0.0
        %1702 = vmatprep.subr.mxu0 0.0
        %1703 = vmatpush1.msra.mxu0 0.0
        %1704 = vmatprep.subr.mxu0 0.0
        %1705 = vmatpush1.msra.mxu0 0.0
        %1706 = vmatprep.subr.mxu0 0.0
        %1707 = vmatpush1.msra.mxu0 0.0
        %1708 = vmatprep.mubr.f32.mxu0 0.0
        %1709 = vmatmul.mubr.f32.gmra.mrb[0].mxu0 %v1642
        %v1710 = vpop.f32.mrb[0].mxu0
        %v1711 = vadd.f32 %v1639, %v1710
        %v1712 = vpop.f32.mrb[0].mxu0
        %1713 = vdwg.mxu0
        %v1714 = vmul.f32 %v1711, 0.5
        %v1715 = vmul.f32 %v1711, 0.044715
        %v1716 = vmul.f32 %v1715, %v1711
        %v1717 = vmul.f32 %v1716, %v1711
        %v1718 = vadd.f32 %v1711, %v1717
        %v1719 = vmul.f32 %v1718, 0.7978846
        %v1720 = vtanh.pop %v1719
        %v1721 = vadd.f32 %v1720, 1.0
        %v1722 = vmul.f32 %v1714, %v1721
        %v1723 = vld [vmem:[%s10] sm:$0x1]
        %v1724 = vld [vmem:[%s11] sm:$0x1]
        %1725 = vadd.xlane.f32.xlu0 %v1722
        %v1726 = vpop.xlane.xlu0 %1725
        %v1727 = vrcp.pop 128.0
        %v1728 = vmul.f32 %v1726, %v1727
        %v1729 = vsub.f32 %v1722, %v1728
        %v1730 = vmul.f32 %v1729, %v1729
        %1731 = vadd.xlane.f32.xlu0 %v1730
        %v1732 = vpop.xlane.xlu0 %1731
        %v1733 = vmul.f32 %v1732, %v1727
        %v1734 = vadd.f32 %v1733, 1e-05
        %v1735 = vrsqrt.pop %v1734
        %v1736 = vmul.f32 %v1729, %v1735
        %v1738 = vlaneseq
        %v1739 = vshrl.u32 %v1738, 7
        %v1740 = vsub.s32 0, %v1739
        %v1741 = vrot.slane %v1723, %v1740
        %v1743 = vmul.f32 %v1736, %v1741
        %v1745 = vlaneseq
        %v1746 = vshrl.u32 %v1745, 7
        %v1747 = vsub.s32 0, %v1746
        %v1748 = vrot.slane %v1724, %v1747
        %v1750 = vadd.f32 %v1743, %v1748
        %v1751 = vld [vmem:[%s12] sm:$0xff]
        %v1752 = vld [vmem:[%s12 + $0x8] sm:$0xff]
        %v1753 = vld [vmem:[%s12 + $0x10] sm:$0xff]
        %v1754 = vld [vmem:[%s12 + $0x18] sm:$0xff]
        %v1755 = vld [vmem:[%s12 + $0x20] sm:$0xff]
        %v1756 = vld [vmem:[%s12 + $0x28] sm:$0xff]
        %v1757 = vld [vmem:[%s12 + $0x30] sm:$0xff]
        %v1758 = vld [vmem:[%s12 + $0x38] sm:$0xff]
        %v1759 = vld [vmem:[%s12 + $0x40] sm:$0xff]
        %v1760 = vld [vmem:[%s12 + $0x48] sm:$0xff]
        %v1761 = vld [vmem:[%s12 + $0x50] sm:$0xff]
        %v1762 = vld [vmem:[%s12 + $0x58] sm:$0xff]
        %v1763 = vld [vmem:[%s12 + $0x60] sm:$0xff]
        %v1764 = vld [vmem:[%s12 + $0x68] sm:$0xff]
        %v1765 = vld [vmem:[%s12 + $0x70] sm:$0xff]
        %v1766 = vld [vmem:[%s12 + $0x78] sm:$0xff]
        %v1767 = vld [vmem:[%s13] sm:$0x1]
        %v1769 = vlaneseq
        %v1770 = vshrl.u32 %v1769, 7
        %v1771 = vsub.s32 0, %v1770
        %v1772 = vrot.slane %v1767, %v1771
        %1774 = vmatprep.subr.mxu0 0.0
        %1775 = vmatpush1.msra.mxu0 %v1751
        %1776 = vmatprep.subr.mxu0 0.0
        %1777 = vmatpush1.msra.mxu0 %v1752
        %1778 = vmatprep.subr.mxu0 0.0
        %1779 = vmatpush1.msra.mxu0 %v1753
        %1780 = vmatprep.subr.mxu0 0.0
        %1781 = vmatpush1.msra.mxu0 %v1754
        %1782 = vmatprep.subr.mxu0 0.0
        %1783 = vmatpush1.msra.mxu0 %v1755
        %1784 = vmatprep.subr.mxu0 0.0
        %1785 = vmatpush1.msra.mxu0 %v1756
        %1786 = vmatprep.subr.mxu0 0.0
        %1787 = vmatpush1.msra.mxu0 %v1757
        %1788 = vmatprep.subr.mxu0 0.0
        %1789 = vmatpush1.msra.mxu0 %v1758
        %1790 = vmatprep.subr.mxu0 0.0
        %1791 = vmatpush1.msra.mxu0 %v1759
        %1792 = vmatprep.subr.mxu0 0.0
        %1793 = vmatpush1.msra.mxu0 %v1760
        %1794 = vmatprep.subr.mxu0 0.0
        %1795 = vmatpush1.msra.mxu0 %v1761
        %1796 = vmatprep.subr.mxu0 0.0
        %1797 = vmatpush1.msra.mxu0 %v1762
        %1798 = vmatprep.subr.mxu0 0.0
        %1799 = vmatpush1.msra.mxu0 %v1763
        %1800 = vmatprep.subr.mxu0 0.0
        %1801 = vmatpush1.msra.mxu0 %v1764
        %1802 = vmatprep.subr.mxu0 0.0
        %1803 = vmatpush1.msra.mxu0 %v1765
        %1804 = vmatprep.subr.mxu0 0.0
        %1805 = vmatpush1.msra.mxu0 %v1766
        %1806 = vmatprep.subr.mxu0 0.0
        %1807 = vmatpush1.msra.mxu0 0.0
        %1808 = vmatprep.subr.mxu0 0.0
        %1809 = vmatpush1.msra.mxu0 0.0
        %1810 = vmatprep.subr.mxu0 0.0
        %1811 = vmatpush1.msra.mxu0 0.0
        %1812 = vmatprep.subr.mxu0 0.0
        %1813 = vmatpush1.msra.mxu0 0.0
        %1814 = vmatprep.subr.mxu0 0.0
        %1815 = vmatpush1.msra.mxu0 0.0
        %1816 = vmatprep.subr.mxu0 0.0
        %1817 = vmatpush1.msra.mxu0 0.0
        %1818 = vmatprep.subr.mxu0 0.0
        %1819 = vmatpush1.msra.mxu0 0.0
        %1820 = vmatprep.subr.mxu0 0.0
        %1821 = vmatpush1.msra.mxu0 0.0
        %1822 = vmatprep.subr.mxu0 0.0
        %1823 = vmatpush1.msra.mxu0 0.0
        %1824 = vmatprep.subr.mxu0 0.0
        %1825 = vmatpush1.msra.mxu0 0.0
        %1826 = vmatprep.subr.mxu0 0.0
        %1827 = vmatpush1.msra.mxu0 0.0
        %1828 = vmatprep.subr.mxu0 0.0
        %1829 = vmatpush1.msra.mxu0 0.0
        %1830 = vmatprep.subr.mxu0 0.0
        %1831 = vmatpush1.msra.mxu0 0.0
        %1832 = vmatprep.subr.mxu0 0.0
        %1833 = vmatpush1.msra.mxu0 0.0
        %1834 = vmatprep.subr.mxu0 0.0
        %1835 = vmatpush1.msra.mxu0 0.0
        %1836 = vmatprep.subr.mxu0 0.0
        %1837 = vmatpush1.msra.mxu0 0.0
        %1838 = vmatprep.mubr.f32.mxu0 0.0
        %1839 = vmatmul.mubr.f32.gmra.mrb[0].mxu0 %v1750
        %v1840 = vpop.f32.mrb[0].mxu0
        %v1841 = vadd.f32 %v1772, %v1840
        %v1842 = vpop.f32.mrb[0].mxu0
        %1843 = vdwg.mxu0
        %v1844 = vmul.f32 %v1841, %v632
        %v1845 = vadd.f32 %v1598, %v1844
        %1846 = vst.msk [vmem:[%s485] sm:$0xff] %vm1601, %v1845
        %s1847 = sand.u32 %s354, 1
        %s1848 = scalar_lea.sflag [#allocation6], %s1847
        %s1849 = sand.u32 %s354, 1
        %s1850 = smul.addr %s1849, 8
        %s1851 = scalar_lea.vmem [#allocation5], %s1850
        // Predicated region
        $region81: #{tpu_custom_call.1} parent=75 // pred_check
          %p1852 = pneg %p364
        $region82: #{tpu_custom_call.1} parent=75 // pred_check_branch
          %1854 = sbr.rel (%p1852) target = $region84
        $region83: #{tpu_custom_call.1} parent=75 // pred_region
          %s1856 = ssub.s32 128, 128
          %1857 = vsyncadd %s1848, %s1856
          %s1858 = sadd.s32 %s33, %s32
          %s1859 = smul.addr %s1858, 128
          %s1860 = scalar_lea.hbm %s14, %s1859
          %s1862 = sshll.u32 %s1851, 4
          %s1863 = int_to_ptr.vmem [resolvable:$true] %s1862
          %1865 = dma.vmem_to_hbm [thread:$0]  %s1863, 128, %s1860, %s1848
        $region84: #{tpu_custom_call.1} parent=75 // pred_fallthru
          _
      $region76: #{tpu_custom_call.1} parent=5 // pred_fallthru
        _
      %p1866 = scmp.le.s32.totalorder 2, %s23
      // Predicated region
      $region85: #{tpu_custom_call.1} parent=5 // pred_check
        %p1867 = pneg %p1866
      $region86: #{tpu_custom_call.1} parent=5 // pred_check_branch
        %1869 = sbr.rel (%p1867) target = $region88
      $region87: #{tpu_custom_call.1} parent=5 // pred_region
        %s1870 = ssub.s32 %s23, 2
        // Predicated region
        $region89: #{tpu_custom_call.1} parent=87 // pred_check
          %p1871 = pneg %p370
        $region90: #{tpu_custom_call.1} parent=87 // pred_check_branch
          %1873 = sbr.rel (%p1871) target = $region92
        $region91: #{tpu_custom_call.1} parent=87 // pred_region
          %s1874 = sand.u32 %s355, 1
          %s1875 = scalar_lea.sflag [#allocation6], %s1874
          %s1876 = sand.u32 %s355, 1
          %s1877 = smul.addr %s1876, 8
          %s1878 = scalar_lea.vmem [#allocation5], %s1877
          %1879 = dma.done %s1875, 128
        $region92: #{tpu_custom_call.1} parent=87 // pred_fallthru
          _
      $region88: #{tpu_custom_call.1} parent=5 // pred_fallthru
        _
    $region6: #{tpu_custom_call.1} parent=1 // loop_footer
      %s27 = sadd.s32 1, %s23
    $region7: #{tpu_custom_call.1} parent=1 // loop_footer_branch
      %22 = sbr.rel target = $region3
    $region8: #{tpu_custom_call.1} parent=1 // loop_exit
      _
    %1880 = vsyncpa [#allocation6], 1
    %s1881 = scalar_lea.sflag [#allocation6], 1
    %1882 = vsyncpa %s1881, 1

</llo_original>
